<compile_context>
chip_gen: v7x
topology: tpu7x:2x2x1
jax: 0.10.0
libtpu: 0.0.40
codegen_flags: <defaults>
</compile_context>

<pallas_src>
import jax
import jax.numpy as jnp
from jax.experimental import pallas as pl
from jax.experimental.pallas import tpu as pltpu

D_MODEL = 128
N_HEADS = 8
HEAD_DIM = D_MODEL // N_HEADS          # 16
D_FF = 512
PATCH_LEN = 16
EPS = 1e-5


def _round_up(n, m):
    return (n + m - 1) // m * m


def _layernorm(x, gamma, beta):
    mu = jnp.mean(x, axis=-1, keepdims=True)
    var = jnp.mean(jnp.square(x - mu), axis=-1, keepdims=True)
    return (x - mu) * jax.lax.rsqrt(var + EPS) * gamma + beta


def _vmem_bytes(tb, p_cnt):
    """Rough per-step VMEM need: I/O double-buffers + resident weights + temps."""
    tbp = tb * p_cnt
    weights = 2 * 2 * (PATCH_LEN * 2 * D_MODEL + D_MODEL * D_MODEL + 2 * D_MODEL * D_FF)
    return (2 * PATCH_LEN * tbp * 2          # patches double-buffer (bf16)
            + 2 * tb * D_MODEL * 4           # output double-buffer (f32)
            + weights                        # resident bf16 weights (double-buffered)
            + 6 * tbp * D_MODEL * 4          # fused-matmul output + softmax temporaries
            + 2 * tb * D_FF * 4)             # FFN temporaries


def cls_extractor_kernel(patches_ref, cls_ref, v_cls_ref, s0_ref,
                         w_kvs_ref, b_kvs_ref, w_out_ref, b_out_ref,
                         ln1_g_ref, ln1_b_ref, w1_ref, b1_ref,
                         w2_ref, b2_ref, ln2_g_ref, ln2_b_ref, o_ref):
    f32, bf16 = jnp.float32, jnp.bfloat16
    tb = o_ref.shape[0]                       # samples in this batch tile
    tbp = patches_ref.shape[1]                # tb * P (lane-dense operand)
    p_cnt = tbp // tb                         # patches per sample

    # ---- fused V projection + broadcast per-head CLS scores (single MXU op) ----
    # (16, tb*P) lane-dense patches contracted on dim 0 with the folded (16, 256)
    # weight -> (tb*P, 256) = [ V | per-head scores broadcast across head lanes ].
    vs = jax.lax.dot_general(
        patches_ref[...], w_kvs_ref[...],
        dimension_numbers=(((0,), (0,)), ((), ())),
        preferred_element_type=f32) + b_kvs_ref[...]
    v_p = vs[:, :D_MODEL].reshape(tb, p_cnt, D_MODEL)
    s_p = vs[:, D_MODEL:].reshape(tb, p_cnt, D_MODEL)

    # ---- per-sample / per-head softmax over the P patch keys + the CLS key ----
    s_0 = s0_ref[...].reshape(1, 1, D_MODEL)                 # CLS-key score (constant)
    m = jnp.maximum(jnp.max(s_p, axis=1, keepdims=True), s_0)
    e_p = jnp.exp(s_p - m)                                   # (tb, P, 128)
    e_0 = jnp.exp(s_0 - m)                                   # (tb, 1, 128)
    inv = pl.reciprocal(jnp.sum(e_p, axis=1, keepdims=True) + e_0, approx=True)

    # ---- attention output for the CLS row (pure VPU: weights bcast per head) ----
    attn = jnp.sum(e_p * inv * v_p, axis=1)                  # (tb, 128)
    attn = attn + (e_0 * inv)[:, 0, :] * v_cls_ref[...]
    attn = jnp.dot(attn.astype(bf16), w_out_ref[...],
                   preferred_element_type=f32) + b_out_ref[...]

    # ---- post-norm transformer block (norm_first=False, relu), CLS row only ----
    x1 = _layernorm(cls_ref[...] + attn, ln1_g_ref[...], ln1_b_ref[...])
    h = jnp.maximum(jnp.dot(x1.astype(bf16), w1_ref[...],
                            preferred_element_type=f32) + b1_ref[...], 0.0)
    ff = jnp.dot(h.astype(bf16), w2_ref[...],
                 preferred_element_type=f32) + b2_ref[...]
    o_ref[...] = _layernorm(x1 + ff, ln2_g_ref[...], ln2_b_ref[...])


def cls_extractor(x, params, *, tb=256):
    """x: (B, 1, L) channel-first series. Returns (B, 128) CLS features."""
    B, C, L = x.shape
    assert C == 1 and L % PATCH_LEN == 0
    P = L // PATCH_LEN
    assert P % 8 == 0, "patch count must be a multiple of 8 (sublane-aligned per-sample reductions)"

    f32 = jnp.float32
    bf = lambda a: a.astype(jnp.bfloat16)
    hi = jax.lax.Precision.HIGHEST
    scale = 1.0 / (HEAD_DIM ** 0.5)

    # ---- batch tiling: tb multiple of 16 so tb*P is a multiple of 128 ----
    tb_eff = _round_up(min(tb, B), 16)
    if B >= 32:                               # keep >= 2 grid steps for v7x megacore
        tb_eff = min(tb_eff, _round_up(pl.cdiv(B, 2), 16))
    # For large B prefer tb dividing B so the pad-copy below is skipped.
    B_pad = _round_up(B, tb_eff)

    # ---- lane-dense patch operand: (PATCH_LEN, B_pad*P), last dim % 128 == 0 ----
    patches = x.reshape(B, P, PATCH_LEN)
    if B_pad != B:
        patches = jnp.concatenate(
            [patches, jnp.zeros((B_pad - B, P, PATCH_LEN), patches.dtype)], axis=0)
    patches_t = bf(patches.reshape(B_pad * P, PATCH_LEN).T)          # (16, B_pad*P)

    # ---- fold patch-embed / K / V / CLS-query weights (batch independent, f32) ----
    w_q = params['w_in'][:, :D_MODEL]
    w_k = params['w_in'][:, D_MODEL:2 * D_MODEL]
    w_v = params['w_in'][:, 2 * D_MODEL:]
    w_kf = jnp.dot(params['w_enc'], w_k, precision=hi)               # (16, 128)
    w_vf = jnp.dot(params['w_enc'], w_v, precision=hi)               # (16, 128)
    b_kf = jnp.dot(params['b_enc'], w_k, precision=hi) + params['b_in'][:, D_MODEL:2 * D_MODEL]
    b_vf = jnp.dot(params['b_enc'], w_v, precision=hi) + params['b_in'][:, 2 * D_MODEL:]

    # CLS-token Q/K/V hoisted out of the kernel (shared across the batch).
    qkv_cls = jnp.dot(bf(params['cls']), bf(params['w_in']),
                      preferred_element_type=f32) + params['b_in']   # (1, 384)
    q_cls = qkv_cls[:, :D_MODEL] * scale                             # scale folded into q
    k_cls = qkv_cls[:, D_MODEL:2 * D_MODEL]
    v_cls = qkv_cls[:, 2 * D_MODEL:]

    def per_head_bcast(a):        # dot with q per head, replicate across the head's lanes
        s = (a * q_cls).reshape(a.shape[0], N_HEADS, HEAD_DIM).sum(-1)
        return jnp.repeat(s, HEAD_DIM, axis=1)

    w_s_bc = per_head_bcast(w_kf)                                    # (16, 128)
    b_s_bc = per_head_bcast(b_kf)                                    # (1, 128)
    s0_bc = per_head_bcast(k_cls)                                    # (1, 128)

    w_kvs = bf(jnp.concatenate([w_vf, w_s_bc], axis=1))              # (16, 256) bf16
    b_kvs = jnp.concatenate([b_vf, b_s_bc], axis=1)                  # (1, 256) f32

    args = (patches_t, params['cls'], v_cls, s0_bc, w_kvs, b_kvs,
            bf(params['w_out']), params['b_out'],
            params['ln1_g'], params['ln1_b'],
            bf(params['w1']), params['b1'], bf(params['w2']), params['b2'],
            params['ln2_g'], params['ln2_b'])

    def const_spec(a):
        return pl.BlockSpec(a.shape, lambda b, _n=a.ndim: (0,) * _n)

    in_specs = ([pl.BlockSpec((PATCH_LEN, tb_eff * P), lambda b: (0, b))] +
                [const_spec(a) for a in args[1:]])

    vmem_limit = int(min(max(_vmem_bytes(tb_eff, P), 32 * 1024 * 1024),
                         60 * 1024 * 1024))

    out = pl.pallas_call(
        cls_extractor_kernel,
        out_shape=jax.ShapeDtypeStruct((B_pad, D_MODEL), jnp.float32),
        grid=(B_pad // tb_eff,),
        in_specs=in_specs,
        out_specs=pl.BlockSpec((tb_eff, D_MODEL), lambda b: (b, 0)),
        compiler_params=pltpu.CompilerParams(
            dimension_semantics=("parallel",),
            vmem_limit_bytes=vmem_limit),
    )(*args)
    return out[:B]


def init_params(key):
    ks = jax.random.split(key, 10)

    def n(k, shape, scale=0.02):
        return scale * jax.random.normal(k, shape, jnp.float32)

    return dict(
        cls=n(ks[0], (1, D_MODEL), 1.0),                     # nn.Parameter(1,1,128)
        w_enc=n(ks[1], (PATCH_LEN, D_MODEL)),                # Linear(16, 128)
        b_enc=jnp.zeros((1, D_MODEL), jnp.float32),
        w_in=n(ks[2], (D_MODEL, 3 * D_MODEL)),               # MHA in_proj (Q|K|V)
        b_in=n(ks[3], (1, 3 * D_MODEL)),
        w_out=n(ks[4], (D_MODEL, D_MODEL)),                  # MHA out_proj
        b_out=n(ks[5], (1, D_MODEL)),
        ln1_g=jnp.ones((1, D_MODEL), jnp.float32),
        ln1_b=jnp.zeros((1, D_MODEL), jnp.float32),
        w1=n(ks[6], (D_MODEL, D_FF)),                        # FFN linear1
        b1=n(ks[7], (1, D_FF)),
        w2=n(ks[8], (D_FF, D_MODEL)),                        # FFN linear2
        b2=n(ks[9], (1, D_MODEL)),
        ln2_g=jnp.ones((1, D_MODEL), jnp.float32),
        ln2_b=jnp.zeros((1, D_MODEL), jnp.float32),
    )


def reference(x, p):
    """Pure-JAX reference mirroring PyTorch eval-mode semantics (with the same
    bf16-matmul / f32-accumulate precision policy as the kernel)."""
    bf = lambda a: a.astype(jnp.bfloat16)
    hi = jax.lax.Precision.HIGHEST
    f32 = jnp.float32
    B, _, L = x.shape
    P = L // PATCH_LEN
    patches = x.reshape(B, P, PATCH_LEN)
    lat = jnp.dot(bf(patches), bf(p['w_enc']), preferred_element_type=f32) + p['b_enc']
    cls = jnp.broadcast_to(p['cls'][None], (B, 1, D_MODEL))
    seq = jnp.concatenate([cls, lat], axis=1)
    qkv = jnp.dot(bf(seq), bf(p['w_in']), preferred_element_type=f32) + p['b_in']
    q, k, v = jnp.split(qkv, 3, axis=-1)

    def heads(t):
        return t.reshape(B, -1, N_HEADS, HEAD_DIM).transpose(0, 2, 1, 3)

    qh, kh, vh = heads(q), heads(k), heads(v)
    s = jnp.einsum('bhqd,bhkd->bhqk', qh, kh, precision=hi) / (HEAD_DIM ** 0.5)
    pm = jax.nn.softmax(s, axis=-1)
    o = jnp.einsum('bhqk,bhkd->bhqd', pm, vh, precision=hi)
    o = o.transpose(0, 2, 1, 3).reshape(B, -1, D_MODEL)
    o = jnp.dot(bf(o), bf(p['w_out']), preferred_element_type=f32) + p['b_out']

    x1 = _layernorm(seq + o, p['ln1_g'], p['ln1_b'])
    h = jnp.maximum(jnp.dot(bf(x1), bf(p['w1']), preferred_element_type=f32) + p['b1'], 0.0)
    ff = jnp.dot(bf(h), bf(p['w2']), preferred_element_type=f32) + p['b2']
    x2 = _layernorm(x1 + ff, p['ln2_g'], p['ln2_b'])
    return x2[:, 0]


if __name__ == "__main__":
    key = jax.random.PRNGKey(0)
    k_param, k_x = jax.random.split(key)
    params = init_params(k_param)

    B, C, L = 32, 1, 8 * PATCH_LEN            # 8 patches of length 16 per sample
    x = jax.random.normal(k_x, (B, C, L), jnp.float32)

    fwd = jax.jit(cls_extractor, static_argnames=("tb",))
    out = jax.block_until_ready(fwd(x, params))      # 2 batch tiles of 16 samples
    assert out.shape == (B, D_MODEL)

    ref = jax.block_until_ready(reference(x, params))
    max_err = float(jnp.max(jnp.abs(out - ref)))
    assert jnp.allclose(out, ref, rtol=3e-3, atol=3e-3), f"max abs diff {max_err}"
    print("KERNEL_OK")
</pallas_src>

<mosaic_0001>
module attributes {stable_mosaic.version = 11 : i64} {
  func.func @cls_extractor_kernel(%arg0: i32, %arg1: memref<16x128xbf16, #tpu.memory_space<vmem>>, %arg2: memref<1x128xf32, #tpu.memory_space<vmem>>, %arg3: memref<1x128xf32, #tpu.memory_space<vmem>>, %arg4: memref<1x128xf32, #tpu.memory_space<vmem>>, %arg5: memref<16x256xbf16, #tpu.memory_space<vmem>>, %arg6: memref<1x256xf32, #tpu.memory_space<vmem>>, %arg7: memref<128x128xbf16, #tpu.memory_space<vmem>>, %arg8: memref<1x128xf32, #tpu.memory_space<vmem>>, %arg9: memref<1x128xf32, #tpu.memory_space<vmem>>, %arg10: memref<1x128xf32, #tpu.memory_space<vmem>>, %arg11: memref<128x512xbf16, #tpu.memory_space<vmem>>, %arg12: memref<1x512xf32, #tpu.memory_space<vmem>>, %arg13: memref<512x128xbf16, #tpu.memory_space<vmem>>, %arg14: memref<1x128xf32, #tpu.memory_space<vmem>>, %arg15: memref<1x128xf32, #tpu.memory_space<vmem>>, %arg16: memref<1x128xf32, #tpu.memory_space<vmem>>, %arg17: memref<16x128xf32, #tpu.memory_space<vmem>>) attributes {dimension_semantics = [#tpu.dimension_semantics<parallel>], iteration_bounds = array<i64: 2>, scalar_prefetch = 0 : i64, scratch_operands = 0 : i64, tpu.core_type = #tpu.core_type<tc>, window_params = [{transform_indices = @transform_0, window_bounds = array<i64: 16, 128>}, {pipeline_mode = #tpu.pipeline_mode<synchronous>, transform_indices = @transform_1, window_bounds = array<i64: 1, 128>}, {pipeline_mode = #tpu.pipeline_mode<synchronous>, transform_indices = @transform_2, window_bounds = array<i64: 1, 128>}, {pipeline_mode = #tpu.pipeline_mode<synchronous>, transform_indices = @transform_3, window_bounds = array<i64: 1, 128>}, {pipeline_mode = #tpu.pipeline_mode<synchronous>, transform_indices = @transform_4, window_bounds = array<i64: 16, 256>}, {pipeline_mode = #tpu.pipeline_mode<synchronous>, transform_indices = @transform_5, window_bounds = array<i64: 1, 256>}, {pipeline_mode = #tpu.pipeline_mode<synchronous>, transform_indices = @transform_6, window_bounds = array<i64: 128, 128>}, {pipeline_mode = #tpu.pipeline_mode<synchronous>, transform_indices = @transform_7, window_bounds = array<i64: 1, 128>}, {pipeline_mode = #tpu.pipeline_mode<synchronous>, transform_indices = @transform_8, window_bounds = array<i64: 1, 128>}, {pipeline_mode = #tpu.pipeline_mode<synchronous>, transform_indices = @transform_9, window_bounds = array<i64: 1, 128>}, {pipeline_mode = #tpu.pipeline_mode<synchronous>, transform_indices = @transform_10, window_bounds = array<i64: 128, 512>}, {pipeline_mode = #tpu.pipeline_mode<synchronous>, transform_indices = @transform_11, window_bounds = array<i64: 1, 512>}, {pipeline_mode = #tpu.pipeline_mode<synchronous>, transform_indices = @transform_12, window_bounds = array<i64: 512, 128>}, {pipeline_mode = #tpu.pipeline_mode<synchronous>, transform_indices = @transform_13, window_bounds = array<i64: 1, 128>}, {pipeline_mode = #tpu.pipeline_mode<synchronous>, transform_indices = @transform_14, window_bounds = array<i64: 1, 128>}, {pipeline_mode = #tpu.pipeline_mode<synchronous>, transform_indices = @transform_15, window_bounds = array<i64: 1, 128>}, {transform_indices = @transform_16, window_bounds = array<i64: 16, 128>}]} {
    %c0 = arith.constant 0 : index
    %c0_0 = arith.constant 0 : index
    %0 = vector.load %arg1[%c0, %c0_0] : memref<16x128xbf16, #tpu.memory_space<vmem>>, vector<16x128xbf16>
    %c0_1 = arith.constant 0 : index
    %c0_2 = arith.constant 0 : index
    %1 = vector.load %arg5[%c0_1, %c0_2] : memref<16x256xbf16, #tpu.memory_space<vmem>>, vector<16x256xbf16>
    %cst = arith.constant dense<0.000000e+00> : vector<128x256xf32>
    %2 = tpu.matmul %0, %1, %cst {dimension_numbers = #tpu.dot_dimension_numbers<[0], [0], [1], [1], [0, 1, 1, 1], [], []>} : vector<16x128xbf16>, vector<16x256xbf16>, vector<128x256xf32> -> vector<128x256xf32>
    %c0_3 = arith.constant 0 : index
    %c0_4 = arith.constant 0 : index
    %3 = vector.load %arg6[%c0_3, %c0_4] : memref<1x256xf32, #tpu.memory_space<vmem>>, vector<1x256xf32>
    %4 = vector.broadcast %3 : vector<1x256xf32> to vector<128x256xf32>
    %5 = arith.addf %2, %4 : vector<128x256xf32>
    %6 = vector.extract_strided_slice %5 {offsets = [0, 0], sizes = [128, 128], strides = [1, 1]} : vector<128x256xf32> to vector<128x128xf32>
    %7 = vector.shape_cast %6 : vector<128x128xf32> to vector<16x8x128xf32>
    %8 = vector.extract_strided_slice %5 {offsets = [0, 128], sizes = [128, 128], strides = [1, 1]} : vector<128x256xf32> to vector<128x128xf32>
    %9 = vector.shape_cast %8 : vector<128x128xf32> to vector<16x8x128xf32>
    %c0_5 = arith.constant 0 : index
    %c0_6 = arith.constant 0 : index
    %10 = vector.load %arg4[%c0_5, %c0_6] : memref<1x128xf32, #tpu.memory_space<vmem>>, vector<1x128xf32>
    %11 = vector.shape_cast %10 : vector<1x128xf32> to vector<1x1x128xf32>
    %cst_7 = arith.constant dense<0xFF800000> : vector<16x128xf32>
    %12 = vector.multi_reduction <maximumf>, %9, %cst_7 [1] : vector<16x8x128xf32> to vector<16x128xf32>
    %13 = vector.shape_cast %12 : vector<16x128xf32> to vector<16x1x128xf32>
    %14 = vector.broadcast %11 : vector<1x1x128xf32> to vector<16x1x128xf32>
    %15 = arith.maximumf %13, %14 : vector<16x1x128xf32>
    %16 = vector.broadcast %15 : vector<16x1x128xf32> to vector<16x8x128xf32>
    %17 = arith.subf %9, %16 : vector<16x8x128xf32>
    %18 = math.exp %17 : vector<16x8x128xf32>
    %19 = vector.broadcast %11 : vector<1x1x128xf32> to vector<16x1x128xf32>
    %20 = arith.subf %19, %15 : vector<16x1x128xf32>
    %21 = math.exp %20 : vector<16x1x128xf32>
    %cst_8 = arith.constant dense<0.000000e+00> : vector<16x128xf32>
    %22 = vector.multi_reduction <add>, %18, %cst_8 [1] : vector<16x8x128xf32> to vector<16x128xf32>
    %23 = vector.shape_cast %22 : vector<16x128xf32> to vector<16x1x128xf32>
    %24 = arith.addf %23, %21 : vector<16x1x128xf32>
    %25 = tpu.reciprocal %24 {approx = true} : vector<16x1x128xf32> -> vector<16x1x128xf32>
    %26 = vector.broadcast %25 : vector<16x1x128xf32> to vector<16x8x128xf32>
    %27 = arith.mulf %18, %26 : vector<16x8x128xf32>
    %28 = arith.mulf %27, %7 : vector<16x8x128xf32>
    %cst_9 = arith.constant dense<0.000000e+00> : vector<16x128xf32>
    %29 = vector.multi_reduction <add>, %28, %cst_9 [1] : vector<16x8x128xf32> to vector<16x128xf32>
    %30 = arith.mulf %21, %25 : vector<16x1x128xf32>
    %31 = vector.shape_cast %30 : vector<16x1x128xf32> to vector<16x128xf32>
    %c0_10 = arith.constant 0 : index
    %c0_11 = arith.constant 0 : index
    %32 = vector.load %arg3[%c0_10, %c0_11] : memref<1x128xf32, #tpu.memory_space<vmem>>, vector<1x128xf32>
    %33 = vector.broadcast %32 : vector<1x128xf32> to vector<16x128xf32>
    %34 = arith.mulf %31, %33 : vector<16x128xf32>
    %35 = arith.addf %29, %34 : vector<16x128xf32>
    %36 = arith.truncf %35 : vector<16x128xf32> to vector<16x128xbf16>
    %c0_12 = arith.constant 0 : index
    %c0_13 = arith.constant 0 : index
    %37 = vector.load %arg7[%c0_12, %c0_13] : memref<128x128xbf16, #tpu.memory_space<vmem>>, vector<128x128xbf16>
    %cst_14 = arith.constant dense<0.000000e+00> : vector<16x128xf32>
    %38 = tpu.matmul %36, %37, %cst_14 {dimension_numbers = #tpu.dot_dimension_numbers<[1], [0], [0], [1], [0, 0, 1, 1], [], []>} : vector<16x128xbf16>, vector<128x128xbf16>, vector<16x128xf32> -> vector<16x128xf32>
    %c0_15 = arith.constant 0 : index
    %c0_16 = arith.constant 0 : index
    %39 = vector.load %arg8[%c0_15, %c0_16] : memref<1x128xf32, #tpu.memory_space<vmem>>, vector<1x128xf32>
    %40 = vector.broadcast %39 : vector<1x128xf32> to vector<16x128xf32>
    %41 = arith.addf %38, %40 : vector<16x128xf32>
    %c0_17 = arith.constant 0 : index
    %c0_18 = arith.constant 0 : index
    %42 = vector.load %arg2[%c0_17, %c0_18] : memref<1x128xf32, #tpu.memory_space<vmem>>, vector<1x128xf32>
    %43 = vector.broadcast %42 : vector<1x128xf32> to vector<16x128xf32>
    %44 = arith.addf %43, %41 : vector<16x128xf32>
    %c0_19 = arith.constant 0 : index
    %c0_20 = arith.constant 0 : index
    %45 = vector.load %arg9[%c0_19, %c0_20] : memref<1x128xf32, #tpu.memory_space<vmem>>, vector<1x128xf32>
    %c0_21 = arith.constant 0 : index
    %c0_22 = arith.constant 0 : index
    %46 = vector.load %arg10[%c0_21, %c0_22] : memref<1x128xf32, #tpu.memory_space<vmem>>, vector<1x128xf32>
    %cst_23 = arith.constant dense<0.000000e+00> : vector<16xf32>
    %47 = vector.multi_reduction <add>, %44, %cst_23 [1] : vector<16x128xf32> to vector<16xf32>
    %48 = vector.shape_cast %47 : vector<16xf32> to vector<16x1xf32>
    %cst_24 = arith.constant 1.280000e+02 : f32
    %49 = vector.broadcast %cst_24 : f32 to vector<16x1xf32>
    %50 = arith.divf %48, %49 : vector<16x1xf32>
    %51 = vector.broadcast %50 : vector<16x1xf32> to vector<16x128xf32>
    %52 = arith.subf %44, %51 : vector<16x128xf32>
    %53 = arith.mulf %52, %52 : vector<16x128xf32>
    %cst_25 = arith.constant dense<0.000000e+00> : vector<16xf32>
    %54 = vector.multi_reduction <add>, %53, %cst_25 [1] : vector<16x128xf32> to vector<16xf32>
    %55 = vector.shape_cast %54 : vector<16xf32> to vector<16x1xf32>
    %cst_26 = arith.constant 1.280000e+02 : f32
    %56 = vector.broadcast %cst_26 : f32 to vector<16x1xf32>
    %57 = arith.divf %55, %56 : vector<16x1xf32>
    %58 = vector.broadcast %50 : vector<16x1xf32> to vector<16x128xf32>
    %59 = arith.subf %44, %58 : vector<16x128xf32>
    %cst_27 = arith.constant 9.99999974E-6 : f32
    %60 = vector.broadcast %cst_27 : f32 to vector<16x1xf32>
    %61 = arith.addf %57, %60 : vector<16x1xf32>
    %62 = math.rsqrt %61 : vector<16x1xf32>
    %63 = vector.broadcast %62 : vector<16x1xf32> to vector<16x128xf32>
    %64 = arith.mulf %59, %63 : vector<16x128xf32>
    %65 = vector.broadcast %45 : vector<1x128xf32> to vector<16x128xf32>
    %66 = arith.mulf %64, %65 : vector<16x128xf32>
    %67 = vector.broadcast %46 : vector<1x128xf32> to vector<16x128xf32>
    %68 = arith.addf %66, %67 : vector<16x128xf32>
    %69 = arith.truncf %68 : vector<16x128xf32> to vector<16x128xbf16>
    %c0_28 = arith.constant 0 : index
    %c0_29 = arith.constant 0 : index
    %70 = vector.load %arg11[%c0_28, %c0_29] : memref<128x512xbf16, #tpu.memory_space<vmem>>, vector<128x512xbf16>
    %cst_30 = arith.constant dense<0.000000e+00> : vector<16x512xf32>
    %71 = tpu.matmul %69, %70, %cst_30 {dimension_numbers = #tpu.dot_dimension_numbers<[1], [0], [0], [1], [0, 0, 1, 1], [], []>} : vector<16x128xbf16>, vector<128x512xbf16>, vector<16x512xf32> -> vector<16x512xf32>
    %c0_31 = arith.constant 0 : index
    %c0_32 = arith.constant 0 : index
    %72 = vector.load %arg12[%c0_31, %c0_32] : memref<1x512xf32, #tpu.memory_space<vmem>>, vector<1x512xf32>
    %73 = vector.broadcast %72 : vector<1x512xf32> to vector<16x512xf32>
    %74 = arith.addf %71, %73 : vector<16x512xf32>
    %cst_33 = arith.constant 0.000000e+00 : f32
    %75 = vector.broadcast %cst_33 : f32 to vector<16x512xf32>
    %76 = arith.maximumf %74, %75 : vector<16x512xf32>
    %77 = arith.truncf %76 : vector<16x512xf32> to vector<16x512xbf16>
    %c0_34 = arith.constant 0 : index
    %c0_35 = arith.constant 0 : index
    %78 = vector.load %arg13[%c0_34, %c0_35] : memref<512x128xbf16, #tpu.memory_space<vmem>>, vector<512x128xbf16>
    %cst_36 = arith.constant dense<0.000000e+00> : vector<16x128xf32>
    %79 = tpu.matmul %77, %78, %cst_36 {dimension_numbers = #tpu.dot_dimension_numbers<[1], [0], [0], [1], [0, 0, 1, 1], [], []>} : vector<16x512xbf16>, vector<512x128xbf16>, vector<16x128xf32> -> vector<16x128xf32>
    %c0_37 = arith.constant 0 : index
    %c0_38 = arith.constant 0 : index
    %80 = vector.load %arg14[%c0_37, %c0_38] : memref<1x128xf32, #tpu.memory_space<vmem>>, vector<1x128xf32>
    %81 = vector.broadcast %80 : vector<1x128xf32> to vector<16x128xf32>
    %82 = arith.addf %79, %81 : vector<16x128xf32>
    %83 = arith.addf %68, %82 : vector<16x128xf32>
    %c0_39 = arith.constant 0 : index
    %c0_40 = arith.constant 0 : index
    %84 = vector.load %arg15[%c0_39, %c0_40] : memref<1x128xf32, #tpu.memory_space<vmem>>, vector<1x128xf32>
    %c0_41 = arith.constant 0 : index
    %c0_42 = arith.constant 0 : index
    %85 = vector.load %arg16[%c0_41, %c0_42] : memref<1x128xf32, #tpu.memory_space<vmem>>, vector<1x128xf32>
    %cst_43 = arith.constant dense<0.000000e+00> : vector<16xf32>
    %86 = vector.multi_reduction <add>, %83, %cst_43 [1] : vector<16x128xf32> to vector<16xf32>
    %87 = vector.shape_cast %86 : vector<16xf32> to vector<16x1xf32>
    %cst_44 = arith.constant 1.280000e+02 : f32
    %88 = vector.broadcast %cst_44 : f32 to vector<16x1xf32>
    %89 = arith.divf %87, %88 : vector<16x1xf32>
    %90 = vector.broadcast %89 : vector<16x1xf32> to vector<16x128xf32>
    %91 = arith.subf %83, %90 : vector<16x128xf32>
    %92 = arith.mulf %91, %91 : vector<16x128xf32>
    %cst_45 = arith.constant dense<0.000000e+00> : vector<16xf32>
    %93 = vector.multi_reduction <add>, %92, %cst_45 [1] : vector<16x128xf32> to vector<16xf32>
    %94 = vector.shape_cast %93 : vector<16xf32> to vector<16x1xf32>
    %cst_46 = arith.constant 1.280000e+02 : f32
    %95 = vector.broadcast %cst_46 : f32 to vector<16x1xf32>
    %96 = arith.divf %94, %95 : vector<16x1xf32>
    %97 = vector.broadcast %89 : vector<16x1xf32> to vector<16x128xf32>
    %98 = arith.subf %83, %97 : vector<16x128xf32>
    %cst_47 = arith.constant 9.99999974E-6 : f32
    %99 = vector.broadcast %cst_47 : f32 to vector<16x1xf32>
    %100 = arith.addf %96, %99 : vector<16x1xf32>
    %101 = math.rsqrt %100 : vector<16x1xf32>
    %102 = vector.broadcast %101 : vector<16x1xf32> to vector<16x128xf32>
    %103 = arith.mulf %98, %102 : vector<16x128xf32>
    %104 = vector.broadcast %84 : vector<1x128xf32> to vector<16x128xf32>
    %105 = arith.mulf %103, %104 : vector<16x128xf32>
    %106 = vector.broadcast %85 : vector<1x128xf32> to vector<16x128xf32>
    %107 = arith.addf %105, %106 : vector<16x128xf32>
    %c0_48 = arith.constant 0 : index
    %c0_49 = arith.constant 0 : index
    %108 = vector.load %arg17[%c0_48, %c0_49] : memref<16x128xf32, #tpu.memory_space<vmem>>, vector<16x128xf32>
    tpu.vector_store %arg17[%c0_48, %c0_49], %107 {strides = array<i32>} : memref<16x128xf32, #tpu.memory_space<vmem>>, vector<16x128xf32>,
    return
  }
  func.func @transform_0(%arg0: i32) -> (i32, i32) {
    %c0_i32 = arith.constant 0 : i32
    %c0_i32_0 = arith.constant 0 : i32
    return %c0_i32, %arg0 : i32, i32
  }
  func.func @transform_1(%arg0: i32) -> (i32, i32) {
    %c0_i32 = arith.constant 0 : i32
    %c0_i32_0 = arith.constant 0 : i32
    %c0_i32_1 = arith.constant 0 : i32
    return %c0_i32, %c0_i32_0 : i32, i32
  }
  func.func @transform_2(%arg0: i32) -> (i32, i32) {
    %c0_i32 = arith.constant 0 : i32
    %c0_i32_0 = arith.constant 0 : i32
    %c0_i32_1 = arith.constant 0 : i32
    return %c0_i32, %c0_i32_0 : i32, i32
  }
  func.func @transform_3(%arg0: i32) -> (i32, i32) {
    %c0_i32 = arith.constant 0 : i32
    %c0_i32_0 = arith.constant 0 : i32
    %c0_i32_1 = arith.constant 0 : i32
    return %c0_i32, %c0_i32_0 : i32, i32
  }
  func.func @transform_4(%arg0: i32) -> (i32, i32) {
    %c0_i32 = arith.constant 0 : i32
    %c0_i32_0 = arith.constant 0 : i32
    %c0_i32_1 = arith.constant 0 : i32
    return %c0_i32, %c0_i32_0 : i32, i32
  }
  func.func @transform_5(%arg0: i32) -> (i32, i32) {
    %c0_i32 = arith.constant 0 : i32
    %c0_i32_0 = arith.constant 0 : i32
    %c0_i32_1 = arith.constant 0 : i32
    return %c0_i32, %c0_i32_0 : i32, i32
  }
  func.func @transform_6(%arg0: i32) -> (i32, i32) {
    %c0_i32 = arith.constant 0 : i32
    %c0_i32_0 = arith.constant 0 : i32
    %c0_i32_1 = arith.constant 0 : i32
    return %c0_i32, %c0_i32_0 : i32, i32
  }
  func.func @transform_7(%arg0: i32) -> (i32, i32) {
    %c0_i32 = arith.constant 0 : i32
    %c0_i32_0 = arith.constant 0 : i32
    %c0_i32_1 = arith.constant 0 : i32
    return %c0_i32, %c0_i32_0 : i32, i32
  }
  func.func @transform_8(%arg0: i32) -> (i32, i32) {
    %c0_i32 = arith.constant 0 : i32
    %c0_i32_0 = arith.constant 0 : i32
    %c0_i32_1 = arith.constant 0 : i32
    return %c0_i32, %c0_i32_0 : i32, i32
  }
  func.func @transform_9(%arg0: i32) -> (i32, i32) {
    %c0_i32 = arith.constant 0 : i32
    %c0_i32_0 = arith.constant 0 : i32
    %c0_i32_1 = arith.constant 0 : i32
    return %c0_i32, %c0_i32_0 : i32, i32
  }
  func.func @transform_10(%arg0: i32) -> (i32, i32) {
    %c0_i32 = arith.constant 0 : i32
    %c0_i32_0 = arith.constant 0 : i32
    %c0_i32_1 = arith.constant 0 : i32
    return %c0_i32, %c0_i32_0 : i32, i32
  }
  func.func @transform_11(%arg0: i32) -> (i32, i32) {
    %c0_i32 = arith.constant 0 : i32
    %c0_i32_0 = arith.constant 0 : i32
    %c0_i32_1 = arith.constant 0 : i32
    return %c0_i32, %c0_i32_0 : i32, i32
  }
  func.func @transform_12(%arg0: i32) -> (i32, i32) {
    %c0_i32 = arith.constant 0 : i32
    %c0_i32_0 = arith.constant 0 : i32
    %c0_i32_1 = arith.constant 0 : i32
    return %c0_i32, %c0_i32_0 : i32, i32
  }
  func.func @transform_13(%arg0: i32) -> (i32, i32) {
    %c0_i32 = arith.constant 0 : i32
    %c0_i32_0 = arith.constant 0 : i32
    %c0_i32_1 = arith.constant 0 : i32
    return %c0_i32, %c0_i32_0 : i32, i32
  }
  func.func @transform_14(%arg0: i32) -> (i32, i32) {
    %c0_i32 = arith.constant 0 : i32
    %c0_i32_0 = arith.constant 0 : i32
    %c0_i32_1 = arith.constant 0 : i32
    return %c0_i32, %c0_i32_0 : i32, i32
  }
  func.func @transform_15(%arg0: i32) -> (i32, i32) {
    %c0_i32 = arith.constant 0 : i32
    %c0_i32_0 = arith.constant 0 : i32
    %c0_i32_1 = arith.constant 0 : i32
    return %c0_i32, %c0_i32_0 : i32, i32
  }
  func.func @transform_16(%arg0: i32) -> (i32, i32) {
    %c0_i32 = arith.constant 0 : i32
    %c0_i32_0 = arith.constant 0 : i32
    return %arg0, %c0_i32 : i32, i32
  }
}

</mosaic_0001>

<llo_original>
// kernel: cls_extractor.1
$region0: #{cls_extractor.1}
  #allocation0 [shape = 'u32[]', space=smem, size = 0x4, offset = 0x4, fixed_abs, tag = 'smem constant byte address 0x4 - core index']
  #allocation1 [shape = 'u32[144,128]{1,0:T(1,128)}', space=vmem, size = 0x12000, scoped, tag = 'internal scratch']
  %s0 = inlined_call_operand.vmem [shape: bf16[16,256], index: 0, kind: input, shape index: {}]
  %s1 = inlined_call_operand.vmem [shape: f32[1,128], index: 1, kind: input, shape index: {}]
  %s2 = inlined_call_operand.vmem [shape: f32[1,128], index: 2, kind: input, shape index: {}]
  %s3 = inlined_call_operand.vmem [shape: f32[1,128], index: 3, kind: input, shape index: {}]
  %s4 = inlined_call_operand.vmem [shape: bf16[16,256], index: 4, kind: input, shape index: {}]
  %s5 = inlined_call_operand.vmem [shape: f32[1,256], index: 5, kind: input, shape index: {}]
  %s6 = inlined_call_operand.vmem [shape: bf16[128,128], index: 6, kind: input, shape index: {}]
  %s7 = inlined_call_operand.vmem [shape: f32[1,128], index: 7, kind: input, shape index: {}]
  %s8 = inlined_call_operand.vmem [shape: f32[1,128], index: 8, kind: input, shape index: {}]
  %s9 = inlined_call_operand.vmem [shape: f32[1,128], index: 9, kind: input, shape index: {}]
  %s10 = inlined_call_operand.vmem [shape: bf16[128,512], index: 10, kind: input, shape index: {}]
  %s11 = inlined_call_operand.vmem [shape: f32[1,512], index: 11, kind: input, shape index: {}]
  %s12 = inlined_call_operand.vmem [shape: bf16[512,128], index: 12, kind: input, shape index: {}]
  %s13 = inlined_call_operand.vmem [shape: f32[1,128], index: 13, kind: input, shape index: {}]
  %s14 = inlined_call_operand.vmem [shape: f32[1,128], index: 14, kind: input, shape index: {}]
  %s15 = inlined_call_operand.vmem [shape: f32[1,128], index: 15, kind: input, shape index: {}]
  %s16 = inlined_call_operand.hbm [shape: f32[32,128], index: 16, kind: output, shape index: {}]
  %s17 = sld [smem:[#allocation0]]
  $region138: #{cls_extractor.1} parent=0
    _
  %s19 = ssub.s32 1, %s17
  %s20 = scalar_select 0, %s19, %s17
  $region1: #{cls_extractor.1} parent=0
    #allocation2 [shape = 'u8[8192]{0}', space=vmem, size = 0x2000, scoped, tag = 'input window, operand 0']
    #allocation3 [shape = 'u8[16384]{0}', space=vmem, size = 0x4000, scoped, tag = 'output window, operand 0']
    #allocation4 [shape = 's32[2]{0}', space=sflag, size = 0x8, scoped, tag = 'scoped memory for cls_extractor.1']
    %21 = vsyncpa [#allocation4], 0
    %s22 = scalar_lea.sflag [#allocation4], 1
    %23 = vsyncpa %s22, 0
    loop: start=0, step=1, limit=4
    $region2: #{cls_extractor.1} parent=1 // loop_pre_header
      _
    $region3: #{cls_extractor.1} parent=1 // loop_header
      %s25 = sphi 0, %s29
      %p26 = scmp.ge.s32.totalorder %s25, 4
      %s35 = sphi 0, %s37
      %s38 = sphi 0, %s35
      %s39 = sphi 0, %s38
      %s55 = sphi 0, %s39
      %s59 = sphi 0, %s59
      %s61 = sphi 0, %s59
      %s62 = sphi 0, %s61
      %s76 = sphi 0, %s62
      %s80 = sphi 0, %s80
      %s82 = sphi 0, %s80
      %s83 = sphi 0, %s82
      %s97 = sphi 0, %s83
      %s101 = sphi 0, %s101
      %s103 = sphi 0, %s101
      %s104 = sphi 0, %s103
      %s118 = sphi 0, %s104
      %s122 = sphi 0, %s122
      %s124 = sphi 0, %s122
      %s125 = sphi 0, %s124
      %s139 = sphi 0, %s125
      %s143 = sphi 0, %s143
      %s145 = sphi 0, %s143
      %s146 = sphi 0, %s145
      %s160 = sphi 0, %s146
      %s164 = sphi 0, %s164
      %s166 = sphi 0, %s164
      %s167 = sphi 0, %s166
      %s181 = sphi 0, %s167
      %s185 = sphi 0, %s185
      %s187 = sphi 0, %s185
      %s188 = sphi 0, %s187
      %s202 = sphi 0, %s188
      %s206 = sphi 0, %s206
      %s208 = sphi 0, %s206
      %s209 = sphi 0, %s208
      %s223 = sphi 0, %s209
      %s227 = sphi 0, %s227
      %s229 = sphi 0, %s227
      %s230 = sphi 0, %s229
      %s244 = sphi 0, %s230
      %s248 = sphi 0, %s248
      %s250 = sphi 0, %s248
      %s251 = sphi 0, %s250
      %s265 = sphi 0, %s251
      %s269 = sphi 0, %s269
      %s271 = sphi 0, %s269
      %s272 = sphi 0, %s271
      %s286 = sphi 0, %s272
      %s290 = sphi 0, %s290
      %s292 = sphi 0, %s290
      %s293 = sphi 0, %s292
      %s307 = sphi 0, %s293
      %s311 = sphi 0, %s311
      %s313 = sphi 0, %s311
      %s314 = sphi 0, %s313
      %s328 = sphi 0, %s314
      %s332 = sphi 0, %s332
      %s334 = sphi 0, %s332
      %s335 = sphi 0, %s334
      %s349 = sphi 0, %s335
      %s353 = sphi 0, %s353
      %s355 = sphi 0, %s353
      %s356 = sphi 0, %s355
      %s370 = sphi 0, %s356
      %s376 = sphi 0, %s378
      %s379 = sphi 0, %s376
      %s380 = sphi 0, %s379
      %s396 = sphi 0, %s380
    $region4: #{cls_extractor.1} parent=1 // loop_header_branch
      %28 = sbr.rel (%p26) target = $region8
    $region5: #{cls_extractor.1} parent=1 // loop_body
      %s30 = ssub.s32 %s25, 1
      %s31 = ssub.s32 %s25, 2
      %s32 = sadd.s32 %s25, 1
      %s33 = ssub.s32 %s25, %s32
      %p34 = scmp.eq.s32.totalorder %s33, 0
      %s36 = sadd.s32 %s35, 1
      %s37 = scalar_select %p34, %s35, %s36
      %p40 = pneg %p34
      %p41 = scmp.eq.s32.totalorder %s25, 1
      %p42 = por %p40, %p41
      %p43 = scmp.ne.s32.totalorder %s35, %s38
      %p44 = scmp.eq.s32.totalorder %s25, 0
      %p45 = por %p43, %p44
      %p46 = scmp.ne.s32.totalorder %s35, %s38
      %p47 = scmp.eq.s32.totalorder %s30, 1
      %p48 = por %p46, %p47
      %p49 = scmp.ne.s32.totalorder %s38, %s39
      %p50 = scmp.eq.s32.totalorder %s30, 0
      %p51 = por %p49, %p50
      %p52 = scmp.ne.s32.totalorder %s38, %s39
      %p53 = scmp.eq.s32.totalorder %s31, 1
      %p54 = por %p52, %p53
      %p56 = scmp.ne.s32.totalorder %s39, %s55
      %p57 = scmp.eq.s32.totalorder %s31, 0
      %p58 = por %p56, %p57
      %s60 = sadd.s32 %s59, 1
      %p63 = scmp.eq.s32.totalorder %s25, 1
      %p64 = scmp.ne.s32.totalorder %s59, %s61
      %p65 = scmp.eq.s32.totalorder %s25, 0
      %p66 = por %p64, %p65
      %p67 = scmp.ne.s32.totalorder %s59, %s61
      %p68 = scmp.eq.s32.totalorder %s30, 1
      %p69 = por %p67, %p68
      %p70 = scmp.ne.s32.totalorder %s61, %s62
      %p71 = scmp.eq.s32.totalorder %s30, 0
      %p72 = por %p70, %p71
      %p73 = scmp.ne.s32.totalorder %s61, %s62
      %p74 = scmp.eq.s32.totalorder %s31, 1
      %p75 = por %p73, %p74
      %p77 = scmp.ne.s32.totalorder %s62, %s76
      %p78 = scmp.eq.s32.totalorder %s31, 0
      %p79 = por %p77, %p78
      %s81 = sadd.s32 %s80, 1
      %p84 = scmp.eq.s32.totalorder %s25, 1
      %p85 = scmp.ne.s32.totalorder %s80, %s82
      %p86 = scmp.eq.s32.totalorder %s25, 0
      %p87 = por %p85, %p86
      %p88 = scmp.ne.s32.totalorder %s80, %s82
      %p89 = scmp.eq.s32.totalorder %s30, 1
      %p90 = por %p88, %p89
      %p91 = scmp.ne.s32.totalorder %s82, %s83
      %p92 = scmp.eq.s32.totalorder %s30, 0
      %p93 = por %p91, %p92
      %p94 = scmp.ne.s32.totalorder %s82, %s83
      %p95 = scmp.eq.s32.totalorder %s31, 1
      %p96 = por %p94, %p95
      %p98 = scmp.ne.s32.totalorder %s83, %s97
      %p99 = scmp.eq.s32.totalorder %s31, 0
      %p100 = por %p98, %p99
      %s102 = sadd.s32 %s101, 1
      %p105 = scmp.eq.s32.totalorder %s25, 1
      %p106 = scmp.ne.s32.totalorder %s101, %s103
      %p107 = scmp.eq.s32.totalorder %s25, 0
      %p108 = por %p106, %p107
      %p109 = scmp.ne.s32.totalorder %s101, %s103
      %p110 = scmp.eq.s32.totalorder %s30, 1
      %p111 = por %p109, %p110
      %p112 = scmp.ne.s32.totalorder %s103, %s104
      %p113 = scmp.eq.s32.totalorder %s30, 0
      %p114 = por %p112, %p113
      %p115 = scmp.ne.s32.totalorder %s103, %s104
      %p116 = scmp.eq.s32.totalorder %s31, 1
      %p117 = por %p115, %p116
      %p119 = scmp.ne.s32.totalorder %s104, %s118
      %p120 = scmp.eq.s32.totalorder %s31, 0
      %p121 = por %p119, %p120
      %s123 = sadd.s32 %s122, 1
      %p126 = scmp.eq.s32.totalorder %s25, 1
      %p127 = scmp.ne.s32.totalorder %s122, %s124
      %p128 = scmp.eq.s32.totalorder %s25, 0
      %p129 = por %p127, %p128
      %p130 = scmp.ne.s32.totalorder %s122, %s124
      %p131 = scmp.eq.s32.totalorder %s30, 1
      %p132 = por %p130, %p131
      %p133 = scmp.ne.s32.totalorder %s124, %s125
      %p134 = scmp.eq.s32.totalorder %s30, 0
      %p135 = por %p133, %p134
      %p136 = scmp.ne.s32.totalorder %s124, %s125
      %p137 = scmp.eq.s32.totalorder %s31, 1
      %p138 = por %p136, %p137
      %p140 = scmp.ne.s32.totalorder %s125, %s139
      %p141 = scmp.eq.s32.totalorder %s31, 0
      %p142 = por %p140, %p141
      %s144 = sadd.s32 %s143, 1
      %p147 = scmp.eq.s32.totalorder %s25, 1
      %p148 = scmp.ne.s32.totalorder %s143, %s145
      %p149 = scmp.eq.s32.totalorder %s25, 0
      %p150 = por %p148, %p149
      %p151 = scmp.ne.s32.totalorder %s143, %s145
      %p152 = scmp.eq.s32.totalorder %s30, 1
      %p153 = por %p151, %p152
      %p154 = scmp.ne.s32.totalorder %s145, %s146
      %p155 = scmp.eq.s32.totalorder %s30, 0
      %p156 = por %p154, %p155
      %p157 = scmp.ne.s32.totalorder %s145, %s146
      %p158 = scmp.eq.s32.totalorder %s31, 1
      %p159 = por %p157, %p158
      %p161 = scmp.ne.s32.totalorder %s146, %s160
      %p162 = scmp.eq.s32.totalorder %s31, 0
      %p163 = por %p161, %p162
      %s165 = sadd.s32 %s164, 1
      %p168 = scmp.eq.s32.totalorder %s25, 1
      %p169 = scmp.ne.s32.totalorder %s164, %s166
      %p170 = scmp.eq.s32.totalorder %s25, 0
      %p171 = por %p169, %p170
      %p172 = scmp.ne.s32.totalorder %s164, %s166
      %p173 = scmp.eq.s32.totalorder %s30, 1
      %p174 = por %p172, %p173
      %p175 = scmp.ne.s32.totalorder %s166, %s167
      %p176 = scmp.eq.s32.totalorder %s30, 0
      %p177 = por %p175, %p176
      %p178 = scmp.ne.s32.totalorder %s166, %s167
      %p179 = scmp.eq.s32.totalorder %s31, 1
      %p180 = por %p178, %p179
      %p182 = scmp.ne.s32.totalorder %s167, %s181
      %p183 = scmp.eq.s32.totalorder %s31, 0
      %p184 = por %p182, %p183
      %s186 = sadd.s32 %s185, 1
      %p189 = scmp.eq.s32.totalorder %s25, 1
      %p190 = scmp.ne.s32.totalorder %s185, %s187
      %p191 = scmp.eq.s32.totalorder %s25, 0
      %p192 = por %p190, %p191
      %p193 = scmp.ne.s32.totalorder %s185, %s187
      %p194 = scmp.eq.s32.totalorder %s30, 1
      %p195 = por %p193, %p194
      %p196 = scmp.ne.s32.totalorder %s187, %s188
      %p197 = scmp.eq.s32.totalorder %s30, 0
      %p198 = por %p196, %p197
      %p199 = scmp.ne.s32.totalorder %s187, %s188
      %p200 = scmp.eq.s32.totalorder %s31, 1
      %p201 = por %p199, %p200
      %p203 = scmp.ne.s32.totalorder %s188, %s202
      %p204 = scmp.eq.s32.totalorder %s31, 0
      %p205 = por %p203, %p204
      %s207 = sadd.s32 %s206, 1
      %p210 = scmp.eq.s32.totalorder %s25, 1
      %p211 = scmp.ne.s32.totalorder %s206, %s208
      %p212 = scmp.eq.s32.totalorder %s25, 0
      %p213 = por %p211, %p212
      %p214 = scmp.ne.s32.totalorder %s206, %s208
      %p215 = scmp.eq.s32.totalorder %s30, 1
      %p216 = por %p214, %p215
      %p217 = scmp.ne.s32.totalorder %s208, %s209
      %p218 = scmp.eq.s32.totalorder %s30, 0
      %p219 = por %p217, %p218
      %p220 = scmp.ne.s32.totalorder %s208, %s209
      %p221 = scmp.eq.s32.totalorder %s31, 1
      %p222 = por %p220, %p221
      %p224 = scmp.ne.s32.totalorder %s209, %s223
      %p225 = scmp.eq.s32.totalorder %s31, 0
      %p226 = por %p224, %p225
      %s228 = sadd.s32 %s227, 1
      %p231 = scmp.eq.s32.totalorder %s25, 1
      %p232 = scmp.ne.s32.totalorder %s227, %s229
      %p233 = scmp.eq.s32.totalorder %s25, 0
      %p234 = por %p232, %p233
      %p235 = scmp.ne.s32.totalorder %s227, %s229
      %p236 = scmp.eq.s32.totalorder %s30, 1
      %p237 = por %p235, %p236
      %p238 = scmp.ne.s32.totalorder %s229, %s230
      %p239 = scmp.eq.s32.totalorder %s30, 0
      %p240 = por %p238, %p239
      %p241 = scmp.ne.s32.totalorder %s229, %s230
      %p242 = scmp.eq.s32.totalorder %s31, 1
      %p243 = por %p241, %p242
      %p245 = scmp.ne.s32.totalorder %s230, %s244
      %p246 = scmp.eq.s32.totalorder %s31, 0
      %p247 = por %p245, %p246
      %s249 = sadd.s32 %s248, 1
      %p252 = scmp.eq.s32.totalorder %s25, 1
      %p253 = scmp.ne.s32.totalorder %s248, %s250
      %p254 = scmp.eq.s32.totalorder %s25, 0
      %p255 = por %p253, %p254
      %p256 = scmp.ne.s32.totalorder %s248, %s250
      %p257 = scmp.eq.s32.totalorder %s30, 1
      %p258 = por %p256, %p257
      %p259 = scmp.ne.s32.totalorder %s250, %s251
      %p260 = scmp.eq.s32.totalorder %s30, 0
      %p261 = por %p259, %p260
      %p262 = scmp.ne.s32.totalorder %s250, %s251
      %p263 = scmp.eq.s32.totalorder %s31, 1
      %p264 = por %p262, %p263
      %p266 = scmp.ne.s32.totalorder %s251, %s265
      %p267 = scmp.eq.s32.totalorder %s31, 0
      %p268 = por %p266, %p267
      %s270 = sadd.s32 %s269, 1
      %p273 = scmp.eq.s32.totalorder %s25, 1
      %p274 = scmp.ne.s32.totalorder %s269, %s271
      %p275 = scmp.eq.s32.totalorder %s25, 0
      %p276 = por %p274, %p275
      %p277 = scmp.ne.s32.totalorder %s269, %s271
      %p278 = scmp.eq.s32.totalorder %s30, 1
      %p279 = por %p277, %p278
      %p280 = scmp.ne.s32.totalorder %s271, %s272
      %p281 = scmp.eq.s32.totalorder %s30, 0
      %p282 = por %p280, %p281
      %p283 = scmp.ne.s32.totalorder %s271, %s272
      %p284 = scmp.eq.s32.totalorder %s31, 1
      %p285 = por %p283, %p284
      %p287 = scmp.ne.s32.totalorder %s272, %s286
      %p288 = scmp.eq.s32.totalorder %s31, 0
      %p289 = por %p287, %p288
      %s291 = sadd.s32 %s290, 1
      %p294 = scmp.eq.s32.totalorder %s25, 1
      %p295 = scmp.ne.s32.totalorder %s290, %s292
      %p296 = scmp.eq.s32.totalorder %s25, 0
      %p297 = por %p295, %p296
      %p298 = scmp.ne.s32.totalorder %s290, %s292
      %p299 = scmp.eq.s32.totalorder %s30, 1
      %p300 = por %p298, %p299
      %p301 = scmp.ne.s32.totalorder %s292, %s293
      %p302 = scmp.eq.s32.totalorder %s30, 0
      %p303 = por %p301, %p302
      %p304 = scmp.ne.s32.totalorder %s292, %s293
      %p305 = scmp.eq.s32.totalorder %s31, 1
      %p306 = por %p304, %p305
      %p308 = scmp.ne.s32.totalorder %s293, %s307
      %p309 = scmp.eq.s32.totalorder %s31, 0
      %p310 = por %p308, %p309
      %s312 = sadd.s32 %s311, 1
      %p315 = scmp.eq.s32.totalorder %s25, 1
      %p316 = scmp.ne.s32.totalorder %s311, %s313
      %p317 = scmp.eq.s32.totalorder %s25, 0
      %p318 = por %p316, %p317
      %p319 = scmp.ne.s32.totalorder %s311, %s313
      %p320 = scmp.eq.s32.totalorder %s30, 1
      %p321 = por %p319, %p320
      %p322 = scmp.ne.s32.totalorder %s313, %s314
      %p323 = scmp.eq.s32.totalorder %s30, 0
      %p324 = por %p322, %p323
      %p325 = scmp.ne.s32.totalorder %s313, %s314
      %p326 = scmp.eq.s32.totalorder %s31, 1
      %p327 = por %p325, %p326
      %p329 = scmp.ne.s32.totalorder %s314, %s328
      %p330 = scmp.eq.s32.totalorder %s31, 0
      %p331 = por %p329, %p330
      %s333 = sadd.s32 %s332, 1
      %p336 = scmp.eq.s32.totalorder %s25, 1
      %p337 = scmp.ne.s32.totalorder %s332, %s334
      %p338 = scmp.eq.s32.totalorder %s25, 0
      %p339 = por %p337, %p338
      %p340 = scmp.ne.s32.totalorder %s332, %s334
      %p341 = scmp.eq.s32.totalorder %s30, 1
      %p342 = por %p340, %p341
      %p343 = scmp.ne.s32.totalorder %s334, %s335
      %p344 = scmp.eq.s32.totalorder %s30, 0
      %p345 = por %p343, %p344
      %p346 = scmp.ne.s32.totalorder %s334, %s335
      %p347 = scmp.eq.s32.totalorder %s31, 1
      %p348 = por %p346, %p347
      %p350 = scmp.ne.s32.totalorder %s335, %s349
      %p351 = scmp.eq.s32.totalorder %s31, 0
      %p352 = por %p350, %p351
      %s354 = sadd.s32 %s353, 1
      %p357 = scmp.eq.s32.totalorder %s25, 1
      %p358 = scmp.ne.s32.totalorder %s353, %s355
      %p359 = scmp.eq.s32.totalorder %s25, 0
      %p360 = por %p358, %p359
      %p361 = scmp.ne.s32.totalorder %s353, %s355
      %p362 = scmp.eq.s32.totalorder %s30, 1
      %p363 = por %p361, %p362
      %p364 = scmp.ne.s32.totalorder %s355, %s356
      %p365 = scmp.eq.s32.totalorder %s30, 0
      %p366 = por %p364, %p365
      %p367 = scmp.ne.s32.totalorder %s355, %s356
      %p368 = scmp.eq.s32.totalorder %s31, 1
      %p369 = por %p367, %p368
      %p371 = scmp.ne.s32.totalorder %s356, %s370
      %p372 = scmp.eq.s32.totalorder %s31, 0
      %p373 = por %p371, %p372
      %s374 = ssub.s32 %s25, %s32
      %p375 = scmp.eq.s32.totalorder %s374, 0
      %s377 = sadd.s32 %s376, 1
      %s378 = scalar_select %p375, %s376, %s377
      %p381 = pneg %p375
      %p382 = scmp.eq.s32.totalorder %s25, 1
      %p383 = por %p381, %p382
      %p384 = scmp.ne.s32.totalorder %s376, %s379
      %p385 = scmp.eq.s32.totalorder %s25, 0
      %p386 = por %p384, %p385
      %p387 = scmp.ne.s32.totalorder %s376, %s379
      %p388 = scmp.eq.s32.totalorder %s30, 1
      %p389 = por %p387, %p388
      %p390 = scmp.ne.s32.totalorder %s379, %s380
      %p391 = scmp.eq.s32.totalorder %s30, 0
      %p392 = por %p390, %p391
      %p393 = scmp.ne.s32.totalorder %s379, %s380
      %p394 = scmp.eq.s32.totalorder %s31, 1
      %p395 = por %p393, %p394
      %p397 = scmp.ne.s32.totalorder %s380, %s396
      %p398 = scmp.eq.s32.totalorder %s31, 0
      %p399 = por %p397, %p398
      %p400 = scmp.le.s32.totalorder 1, %s25
      %p401 = scmp.lt.s32.totalorder %s25, 3
      %p402 = pnand %p400, %p401
      %p403 = pneg %p402
      // Predicated region
      $region9: #{cls_extractor.1} parent=5 // pred_check
        _
      $region10: #{cls_extractor.1} parent=5 // pred_check_branch
        %405 = sbr.rel (%p402) target = $region12
      $region11: #{cls_extractor.1} parent=5 // pred_region
        %s406 = ssub.s32 %s25, 1
        // Predicated region
        $region13: #{cls_extractor.1} parent=11 // pred_check
          %p407 = pneg %p72
        $region14: #{cls_extractor.1} parent=11 // pred_check_branch
          %409 = sbr.rel (%p407) target = $region16
        $region15: #{cls_extractor.1} parent=11 // pred_region
          _
        $region16: #{cls_extractor.1} parent=11 // pred_fallthru
          _
        // Predicated region
        $region17: #{cls_extractor.1} parent=11 // pred_check
          %p410 = pneg %p93
        $region18: #{cls_extractor.1} parent=11 // pred_check_branch
          %412 = sbr.rel (%p410) target = $region20
        $region19: #{cls_extractor.1} parent=11 // pred_region
          _
        $region20: #{cls_extractor.1} parent=11 // pred_fallthru
          _
        // Predicated region
        $region21: #{cls_extractor.1} parent=11 // pred_check
          %p413 = pneg %p114
        $region22: #{cls_extractor.1} parent=11 // pred_check_branch
          %415 = sbr.rel (%p413) target = $region24
        $region23: #{cls_extractor.1} parent=11 // pred_region
          _
        $region24: #{cls_extractor.1} parent=11 // pred_fallthru
          _
        // Predicated region
        $region25: #{cls_extractor.1} parent=11 // pred_check
          %p416 = pneg %p135
        $region26: #{cls_extractor.1} parent=11 // pred_check_branch
          %418 = sbr.rel (%p416) target = $region28
        $region27: #{cls_extractor.1} parent=11 // pred_region
          _
        $region28: #{cls_extractor.1} parent=11 // pred_fallthru
          _
        // Predicated region
        $region29: #{cls_extractor.1} parent=11 // pred_check
          %p419 = pneg %p156
        $region30: #{cls_extractor.1} parent=11 // pred_check_branch
          %421 = sbr.rel (%p419) target = $region32
        $region31: #{cls_extractor.1} parent=11 // pred_region
          _
        $region32: #{cls_extractor.1} parent=11 // pred_fallthru
          _
        // Predicated region
        $region33: #{cls_extractor.1} parent=11 // pred_check
          %p422 = pneg %p177
        $region34: #{cls_extractor.1} parent=11 // pred_check_branch
          %424 = sbr.rel (%p422) target = $region36
        $region35: #{cls_extractor.1} parent=11 // pred_region
          _
        $region36: #{cls_extractor.1} parent=11 // pred_fallthru
          _
        // Predicated region
        $region37: #{cls_extractor.1} parent=11 // pred_check
          %p425 = pneg %p198
        $region38: #{cls_extractor.1} parent=11 // pred_check_branch
          %427 = sbr.rel (%p425) target = $region40
        $region39: #{cls_extractor.1} parent=11 // pred_region
          _
        $region40: #{cls_extractor.1} parent=11 // pred_fallthru
          _
        // Predicated region
        $region41: #{cls_extractor.1} parent=11 // pred_check
          %p428 = pneg %p219
        $region42: #{cls_extractor.1} parent=11 // pred_check_branch
          %430 = sbr.rel (%p428) target = $region44
        $region43: #{cls_extractor.1} parent=11 // pred_region
          _
        $region44: #{cls_extractor.1} parent=11 // pred_fallthru
          _
        // Predicated region
        $region45: #{cls_extractor.1} parent=11 // pred_check
          %p431 = pneg %p240
        $region46: #{cls_extractor.1} parent=11 // pred_check_branch
          %433 = sbr.rel (%p431) target = $region48
        $region47: #{cls_extractor.1} parent=11 // pred_region
          _
        $region48: #{cls_extractor.1} parent=11 // pred_fallthru
          _
        // Predicated region
        $region49: #{cls_extractor.1} parent=11 // pred_check
          %p434 = pneg %p261
        $region50: #{cls_extractor.1} parent=11 // pred_check_branch
          %436 = sbr.rel (%p434) target = $region52
        $region51: #{cls_extractor.1} parent=11 // pred_region
          _
        $region52: #{cls_extractor.1} parent=11 // pred_fallthru
          _
        // Predicated region
        $region53: #{cls_extractor.1} parent=11 // pred_check
          %p437 = pneg %p282
        $region54: #{cls_extractor.1} parent=11 // pred_check_branch
          %439 = sbr.rel (%p437) target = $region56
        $region55: #{cls_extractor.1} parent=11 // pred_region
          _
        $region56: #{cls_extractor.1} parent=11 // pred_fallthru
          _
        // Predicated region
        $region57: #{cls_extractor.1} parent=11 // pred_check
          %p440 = pneg %p303
        $region58: #{cls_extractor.1} parent=11 // pred_check_branch
          %442 = sbr.rel (%p440) target = $region60
        $region59: #{cls_extractor.1} parent=11 // pred_region
          _
        $region60: #{cls_extractor.1} parent=11 // pred_fallthru
          _
        // Predicated region
        $region61: #{cls_extractor.1} parent=11 // pred_check
          %p443 = pneg %p324
        $region62: #{cls_extractor.1} parent=11 // pred_check_branch
          %445 = sbr.rel (%p443) target = $region64
        $region63: #{cls_extractor.1} parent=11 // pred_region
          _
        $region64: #{cls_extractor.1} parent=11 // pred_fallthru
          _
        // Predicated region
        $region65: #{cls_extractor.1} parent=11 // pred_check
          %p446 = pneg %p345
        $region66: #{cls_extractor.1} parent=11 // pred_check_branch
          %448 = sbr.rel (%p446) target = $region68
        $region67: #{cls_extractor.1} parent=11 // pred_region
          _
        $region68: #{cls_extractor.1} parent=11 // pred_fallthru
          _
        // Predicated region
        $region69: #{cls_extractor.1} parent=11 // pred_check
          %p449 = pneg %p366
        $region70: #{cls_extractor.1} parent=11 // pred_check_branch
          %451 = sbr.rel (%p449) target = $region72
        $region71: #{cls_extractor.1} parent=11 // pred_region
          _
        $region72: #{cls_extractor.1} parent=11 // pred_fallthru
          _
      $region12: #{cls_extractor.1} parent=5 // pred_fallthru
        _
      %p452 = scmp.lt.s32.totalorder %s25, 2
      // Predicated region
      $region73: #{cls_extractor.1} parent=5 // pred_check
        %p453 = pneg %p452
      $region74: #{cls_extractor.1} parent=5 // pred_check_branch
        %455 = sbr.rel (%p453) target = $region76
      $region75: #{cls_extractor.1} parent=5 // pred_region
        // Predicated region
        $region77: #{cls_extractor.1} parent=75 // pred_check
          %p456 = pneg %p45
        $region78: #{cls_extractor.1} parent=75 // pred_check_branch
          %458 = sbr.rel (%p456) target = $region80
        $region79: #{cls_extractor.1} parent=75 // pred_region
          %s459 = sand.u32 %s35, 1
          %s460 = sand.u32 %s35, 1
          %s461 = smul.addr %s460, 8
          %s462 = scalar_lea.vmem [#allocation2], %s461
          %s463 = smul.addr %s25, 4
          %s464 = scalar_lea.vmem %s0, %s463
          // Predicated region
          $region81: #{cls_extractor.1} parent=79 // pred_check
            _
          $region82: #{cls_extractor.1} parent=79 // pred_check_branch
            %466 = sbr.rel (0) target = $region84
          $region83: #{cls_extractor.1} parent=79 // pred_region
            // Predicated region
            $region85: #{cls_extractor.1} parent=83 // pred_check
              _
            $region86: #{cls_extractor.1} parent=83 // pred_check_branch
              %468 = sbr.rel target = $region88
            $region87: #{cls_extractor.1} parent=83 // pred_region
              // Predicated region
              $region100: #{cls_extractor.1} parent=87 // pred_check
                _
              $region101: #{cls_extractor.1} parent=87 // pred_check_branch
                %485 = sbr.rel (0) target = $region103
              $region102: #{cls_extractor.1} parent=87 // pred_region
                loop: start=0, step=1, limit=1
                $region104: #{cls_extractor.1} parent=102 // loop_pre_header
                  _
                $region105: #{cls_extractor.1} parent=102 // loop_header
                  %s487 = sphi 0, %s491
                  %p488 = scmp.ge.s32.totalorder %s487, 1
                  %s492 = sphi %s464, %s464
                  %s493 = sphi %s462, %s462
                $region106: #{cls_extractor.1} parent=102 // loop_header_branch
                  %490 = sbr.rel (%p488) target = $region110
                $region107: #{cls_extractor.1} parent=102 // loop_body
                  _
                $region108: #{cls_extractor.1} parent=102 // loop_footer
                  %s491 = sadd.s32 1, %s487
                $region109: #{cls_extractor.1} parent=102 // loop_footer_branch
                  %486 = sbr.rel target = $region105
                $region110: #{cls_extractor.1} parent=102 // loop_exit
                  _
                loop: start=0, step=1, limit=1
                $region111: #{cls_extractor.1} parent=102 // loop_pre_header
                  _
                $region112: #{cls_extractor.1} parent=102 // loop_header
                  %s496 = sphi 0, %s500
                  %p497 = scmp.ge.s32.totalorder %s496, 1
                  %s501 = sphi %s464, %s464
                  %s502 = sphi %s462, %s462
                $region113: #{cls_extractor.1} parent=102 // loop_header_branch
                  %499 = sbr.rel (%p497) target = $region117
                $region114: #{cls_extractor.1} parent=102 // loop_body
                  %v503 = vld [vmem:[%s501] sm:$0xf]
                  %504 = vst [vmem:[%s502] sm:$0xf] %v503
                  %v505 = vld [vmem:[%s501 + $0x8] sm:$0xf]
                  %506 = vst [vmem:[%s502 + $0x4] sm:$0xf] %v505
                $region115: #{cls_extractor.1} parent=102 // loop_footer
                  %s500 = sadd.s32 1, %s496
                $region116: #{cls_extractor.1} parent=102 // loop_footer_branch
                  %495 = sbr.rel target = $region112
                $region117: #{cls_extractor.1} parent=102 // loop_exit
                  _
              $region103: #{cls_extractor.1} parent=87 // pred_fallthru
                _
            $region88: #{cls_extractor.1} parent=83 // pred_fallthru
              _
            // Predicated region
            $region89: #{cls_extractor.1} parent=83 // pred_check
              _
            $region90: #{cls_extractor.1} parent=83 // pred_check_branch
              %470 = sbr.rel (0) target = $region92
            $region91: #{cls_extractor.1} parent=83 // pred_region
              loop: start=0, step=1, limit=1
              $region93: #{cls_extractor.1} parent=91 // loop_pre_header
                _
              $region94: #{cls_extractor.1} parent=91 // loop_header
                %s473 = sphi 0, %s477
                %p474 = scmp.ge.s32.totalorder %s473, 1
                %s478 = sphi %s464, %s464
                %s479 = sphi %s462, %s462
              $region95: #{cls_extractor.1} parent=91 // loop_header_branch
                %476 = sbr.rel (%p474) target = $region99
              $region96: #{cls_extractor.1} parent=91 // loop_body
                %v480 = vld [vmem:[%s478] sm:$0xf]
                %481 = vst [vmem:[%s479] sm:$0xf] %v480
                %v482 = vld [vmem:[%s478 + $0x8] sm:$0xf]
                %483 = vst [vmem:[%s479 + $0x4] sm:$0xf] %v482
              $region97: #{cls_extractor.1} parent=91 // loop_footer
                %s477 = sadd.s32 1, %s473
              $region98: #{cls_extractor.1} parent=91 // loop_footer_branch
                %472 = sbr.rel target = $region94
              $region99: #{cls_extractor.1} parent=91 // loop_exit
                _
            $region92: #{cls_extractor.1} parent=83 // pred_fallthru
              _
          $region84: #{cls_extractor.1} parent=79 // pred_fallthru
            _
          %507 = vnop
        $region80: #{cls_extractor.1} parent=75 // pred_fallthru
          _
      $region76: #{cls_extractor.1} parent=5 // pred_fallthru
        _
      %p508 = scmp.le.s32.totalorder 1, %s25
      %p509 = scmp.lt.s32.totalorder %s25, 3
      %p510 = pnand %p508, %p509
      %p511 = pneg %p510
      // Predicated region
      $region118: #{cls_extractor.1} parent=5 // pred_check
        _
      $region119: #{cls_extractor.1} parent=5 // pred_check_branch
        %513 = sbr.rel (%p510) target = $region121
      $region120: #{cls_extractor.1} parent=5 // pred_region
        %s514 = ssub.s32 %s25, 1
        %s515 = sand.u32 %s38, 1
        %s516 = sand.u32 %s38, 1
        %s517 = smul.addr %s516, 8
        %s518 = scalar_lea.vmem [#allocation2], %s517
        // Predicated region
        $region122: #{cls_extractor.1} parent=120 // pred_check
          %p519 = pneg %p51
        $region123: #{cls_extractor.1} parent=120 // pred_check_branch
          %521 = sbr.rel (%p519) target = $region125
        $region124: #{cls_extractor.1} parent=120 // pred_region
          _
        $region125: #{cls_extractor.1} parent=120 // pred_fallthru
          _
        %s522 = sand.u32 %s38, 1
        %s523 = sand.u32 %s38, 1
        %s524 = smul.addr %s523, 8
        %s525 = scalar_lea.vmem [#allocation2], %s524
        %p526 = pneg %p51
        %p527 = pneg %p48
        %p528 = pneg %p72
        %p529 = pneg %p69
        %p530 = pneg %p93
        %p531 = pneg %p90
        %p532 = pneg %p114
        %p533 = pneg %p111
        %p534 = pneg %p135
        %p535 = pneg %p132
        %p536 = pneg %p156
        %p537 = pneg %p153
        %p538 = pneg %p177
        %p539 = pneg %p174
        %p540 = pneg %p198
        %p541 = pneg %p195
        %p542 = pneg %p219
        %p543 = pneg %p216
        %p544 = pneg %p240
        %p545 = pneg %p237
        %p546 = pneg %p261
        %p547 = pneg %p258
        %p548 = pneg %p282
        %p549 = pneg %p279
        %p550 = pneg %p303
        %p551 = pneg %p300
        %p552 = pneg %p324
        %p553 = pneg %p321
        %p554 = pneg %p345
        %p555 = pneg %p342
        %p556 = pneg %p366
        %p557 = pneg %p363
        %p558 = pneg %p392
        %p559 = pneg %p389
        %s560 = sand.u32 %s379, 1
        %s561 = scalar_lea.sflag [#allocation4], %s560
        %s562 = sand.u32 %s379, 1
        %s563 = smul.addr %s562, 16
        %s564 = scalar_lea.vmem [#allocation3], %s563
        %s565 = smul.u32 2, %s30
        %v567 = vld [vmem:[%s518] sm:$0xf]
        %v568 = vld [vmem:[%s518 + $0x4] sm:$0xf]
        %v569 = vld [vmem:[%s4] sm:$0xff]
        %v570 = vld [vmem:[%s4 + $0x8] sm:$0xff]
        %v571 = vld [vmem:[%s5] sm:$0x3]
        %v573 = vlaneseq
        %v574 = vshrl.u32 %v573, 7
        %v575 = vsub.s32 0, %v574
        %v576 = vrot.slane %v571, %v575
        %v577 = vlaneseq
        %v578 = vshrl.u32 %v577, 7
        %v579 = vsub.s32 1, %v578
        %v580 = vrot.slane %v571, %v579
        %v585 = vunpack.c.l.b16 %v567
        %v586 = vunpack.c.l.b16 %v568
        %v587 = vpack.c.b16 %v586, %v585
        %589 = vxpose.xlu0.c.b16.start [1/8] %v587, 128
        %590 = vxpose.xlu0.c.b16.cont [2/8] 0, 128
        %591 = vxpose.xlu0.c.b16.cont [3/8] 0, 128
        %592 = vxpose.xlu0.c.b16.cont [4/8] 0, 128
        %593 = vxpose.xlu0.c.b16.cont [5/8] 0, 128
        %594 = vxpose.xlu0.c.b16.cont [6/8] 0, 128
        %595 = vxpose.xlu0.c.b16.cont [7/8] 0, 128
        %596 = vxpose.xlu0.c.b16.end [8/8] 0, 128
        %v597 = vpop.trf.xlu0
        %v598 = vpop.trf.xlu0
        %v599 = vpop.trf.xlu0
        %v600 = vpop.trf.xlu0
        %v601 = vpop.trf.xlu0
        %v602 = vpop.trf.xlu0
        %v603 = vpop.trf.xlu0
        %v604 = vpop.trf.xlu0
        %v607 = vunpack.c.l.b16 %v569
        %v608 = vunpack.c.h.b16 %v569
        %v609 = vunpack.c.l.b16 %v570
        %v610 = vunpack.c.h.b16 %v570
        %v611 = vpack.c.b16 %v609, %v607
        %v612 = vpack.c.b16 %v610, %v608
        %vm615 = vcmask 130048
        %v617 = vsel %vm615, %v597, 0
        %v620 = vsel %vm615, %v598, 0
        %v623 = vsel %vm615, %v599, 0
        %v626 = vsel %vm615, %v600, 0
        %v629 = vsel %vm615, %v601, 0
        %v632 = vsel %vm615, %v602, 0
        %v635 = vsel %vm615, %v603, 0
        %v638 = vsel %vm615, %v604, 0
        %640 = vmatprep.subr.bf16.mxu0 %v612
        %641 = vmatpush1.bf16.msra.mxu0 %v611
        %642 = vmatprep.subr.bf16.mxu0 0
        %643 = vmatpush1.bf16.msra.mxu0 0
        %644 = vmatprep.subr.bf16.mxu0 0
        %645 = vmatpush1.bf16.msra.mxu0 0
        %646 = vmatprep.subr.bf16.mxu0 0
        %647 = vmatpush1.bf16.msra.mxu0 0
        %648 = vmatprep.subr.bf16.mxu0 0
        %649 = vmatpush1.bf16.msra.mxu0 0
        %650 = vmatprep.subr.bf16.mxu0 0
        %651 = vmatpush1.bf16.msra.mxu0 0
        %652 = vmatprep.subr.bf16.mxu0 0
        %653 = vmatpush1.bf16.msra.mxu0 0
        %654 = vmatprep.subr.bf16.mxu0 0
        %655 = vmatpush1.bf16.msra.mxu0 0
        %656 = vmatprep.subr.bf16.mxu0 0
        %657 = vmatpush1.bf16.msra.mxu0 0
        %658 = vmatprep.subr.bf16.mxu0 0
        %659 = vmatpush1.bf16.msra.mxu0 0
        %660 = vmatprep.subr.bf16.mxu0 0
        %661 = vmatpush1.bf16.msra.mxu0 0
        %662 = vmatprep.subr.bf16.mxu0 0
        %663 = vmatpush1.bf16.msra.mxu0 0
        %664 = vmatprep.subr.bf16.mxu0 0
        %665 = vmatpush1.bf16.msra.mxu0 0
        %666 = vmatprep.subr.bf16.mxu0 0
        %667 = vmatpush1.bf16.msra.mxu0 0
        %668 = vmatprep.subr.bf16.mxu0 0
        %669 = vmatpush1.bf16.msra.mxu0 0
        %670 = vmatprep.subr.bf16.mxu0 0
        %671 = vmatpush1.bf16.msra.mxu0 0
        %672 = vmatprep.mubr.bf16.mxu0 0
        %673 = vmatmul.mubr.bf16.gmra.mrb[0].mxu0 %v617
        %v674 = vpop.f32.mrb[0].mxu0
        %v675 = vadd.f32 %v576, %v674
        %v676 = vpop.f32.mrb[0].mxu0
        %v677 = vadd.f32 %v580, %v676
        %v678 = vpop.f32.mrb[0].mxu0
        %v679 = vadd.f32 %v576, %v678
        %v680 = vpop.f32.mrb[0].mxu0
        %v681 = vadd.f32 %v580, %v680
        %682 = vmatprep.mubr.bf16.mxu0 0
        %683 = vmatmul.mubr.bf16.gmra.mrb[0].mxu0 %v620
        %v684 = vpop.f32.mrb[0].mxu0
        %v685 = vadd.f32 %v576, %v684
        %v686 = vpop.f32.mrb[0].mxu0
        %v687 = vadd.f32 %v580, %v686
        %v688 = vpop.f32.mrb[0].mxu0
        %v689 = vadd.f32 %v576, %v688
        %v690 = vpop.f32.mrb[0].mxu0
        %v691 = vadd.f32 %v580, %v690
        %692 = vmatprep.mubr.bf16.mxu0 0
        %693 = vmatmul.mubr.bf16.gmra.mrb[0].mxu0 %v623
        %v694 = vpop.f32.mrb[0].mxu0
        %v695 = vadd.f32 %v576, %v694
        %v696 = vpop.f32.mrb[0].mxu0
        %v697 = vadd.f32 %v580, %v696
        %v698 = vpop.f32.mrb[0].mxu0
        %v699 = vadd.f32 %v576, %v698
        %v700 = vpop.f32.mrb[0].mxu0
        %v701 = vadd.f32 %v580, %v700
        %702 = vmatprep.mubr.bf16.mxu0 0
        %703 = vmatmul.mubr.bf16.gmra.mrb[0].mxu0 %v626
        %v704 = vpop.f32.mrb[0].mxu0
        %v705 = vadd.f32 %v576, %v704
        %v706 = vpop.f32.mrb[0].mxu0
        %v707 = vadd.f32 %v580, %v706
        %v708 = vpop.f32.mrb[0].mxu0
        %v709 = vadd.f32 %v576, %v708
        %v710 = vpop.f32.mrb[0].mxu0
        %v711 = vadd.f32 %v580, %v710
        %712 = vmatprep.mubr.bf16.mxu0 0
        %713 = vmatmul.mubr.bf16.gmra.mrb[0].mxu0 %v629
        %v714 = vpop.f32.mrb[0].mxu0
        %v715 = vadd.f32 %v576, %v714
        %v716 = vpop.f32.mrb[0].mxu0
        %v717 = vadd.f32 %v580, %v716
        %v718 = vpop.f32.mrb[0].mxu0
        %v719 = vadd.f32 %v576, %v718
        %v720 = vpop.f32.mrb[0].mxu0
        %v721 = vadd.f32 %v580, %v720
        %722 = vmatprep.mubr.bf16.mxu0 0
        %723 = vmatmul.mubr.bf16.gmra.mrb[0].mxu0 %v632
        %v724 = vpop.f32.mrb[0].mxu0
        %v725 = vadd.f32 %v576, %v724
        %v726 = vpop.f32.mrb[0].mxu0
        %v727 = vadd.f32 %v580, %v726
        %v728 = vpop.f32.mrb[0].mxu0
        %v729 = vadd.f32 %v576, %v728
        %v730 = vpop.f32.mrb[0].mxu0
        %v731 = vadd.f32 %v580, %v730
        %732 = vmatprep.mubr.bf16.mxu0 0
        %733 = vmatmul.mubr.bf16.gmra.mrb[0].mxu0 %v635
        %v734 = vpop.f32.mrb[0].mxu0
        %v735 = vadd.f32 %v576, %v734
        %v736 = vpop.f32.mrb[0].mxu0
        %v737 = vadd.f32 %v580, %v736
        %v738 = vpop.f32.mrb[0].mxu0
        %v739 = vadd.f32 %v576, %v738
        %v740 = vpop.f32.mrb[0].mxu0
        %v741 = vadd.f32 %v580, %v740
        %742 = vmatprep.mubr.bf16.mxu0 0
        %743 = vmatmul.mubr.bf16.gmra.mrb[0].mxu0 %v638
        %v744 = vpop.f32.mrb[0].mxu0
        %v745 = vadd.f32 %v576, %v744
        %v746 = vpop.f32.mrb[0].mxu0
        %v747 = vadd.f32 %v580, %v746
        %v748 = vpop.f32.mrb[0].mxu0
        %v749 = vadd.f32 %v576, %v748
        %v750 = vpop.f32.mrb[0].mxu0
        %v751 = vadd.f32 %v580, %v750
        %752 = vdwg.mxu0
        %v753 = vld [vmem:[%s3] sm:$0x1]
        %v754 = vrot.slane %v677, 4
        %v755 = vmax.f32 %v677, %v754
        %v756 = vrot.slane %v755, 2
        %v757 = vmax.f32 %v755, %v756
        %v758 = vrot.slane %v757, 1
        %v759 = vmax.f32 %v757, %v758
        %v760 = vrot.slane %v681, 4
        %v761 = vmax.f32 %v681, %v760
        %v762 = vrot.slane %v761, 2
        %v763 = vmax.f32 %v761, %v762
        %v764 = vrot.slane %v763, 1
        %v765 = vmax.f32 %v763, %v764
        %v766 = vrot.slane %v687, 4
        %v767 = vmax.f32 %v687, %v766
        %v768 = vrot.slane %v767, 2
        %v769 = vmax.f32 %v767, %v768
        %v770 = vrot.slane %v769, 1
        %v771 = vmax.f32 %v769, %v770
        %v772 = vrot.slane %v691, 4
        %v773 = vmax.f32 %v691, %v772
        %v774 = vrot.slane %v773, 2
        %v775 = vmax.f32 %v773, %v774
        %v776 = vrot.slane %v775, 1
        %v777 = vmax.f32 %v775, %v776
        %v778 = vrot.slane %v697, 4
        %v779 = vmax.f32 %v697, %v778
        %v780 = vrot.slane %v779, 2
        %v781 = vmax.f32 %v779, %v780
        %v782 = vrot.slane %v781, 1
        %v783 = vmax.f32 %v781, %v782
        %v784 = vrot.slane %v701, 4
        %v785 = vmax.f32 %v701, %v784
        %v786 = vrot.slane %v785, 2
        %v787 = vmax.f32 %v785, %v786
        %v788 = vrot.slane %v787, 1
        %v789 = vmax.f32 %v787, %v788
        %v790 = vrot.slane %v707, 4
        %v791 = vmax.f32 %v707, %v790
        %v792 = vrot.slane %v791, 2
        %v793 = vmax.f32 %v791, %v792
        %v794 = vrot.slane %v793, 1
        %v795 = vmax.f32 %v793, %v794
        %v796 = vrot.slane %v711, 4
        %v797 = vmax.f32 %v711, %v796
        %v798 = vrot.slane %v797, 2
        %v799 = vmax.f32 %v797, %v798
        %v800 = vrot.slane %v799, 1
        %v801 = vmax.f32 %v799, %v800
        %v802 = vrot.slane %v717, 4
        %v803 = vmax.f32 %v717, %v802
        %v804 = vrot.slane %v803, 2
        %v805 = vmax.f32 %v803, %v804
        %v806 = vrot.slane %v805, 1
        %v807 = vmax.f32 %v805, %v806
        %v808 = vrot.slane %v721, 4
        %v809 = vmax.f32 %v721, %v808
        %v810 = vrot.slane %v809, 2
        %v811 = vmax.f32 %v809, %v810
        %v812 = vrot.slane %v811, 1
        %v813 = vmax.f32 %v811, %v812
        %v814 = vrot.slane %v727, 4
        %v815 = vmax.f32 %v727, %v814
        %v816 = vrot.slane %v815, 2
        %v817 = vmax.f32 %v815, %v816
        %v818 = vrot.slane %v817, 1
        %v819 = vmax.f32 %v817, %v818
        %v820 = vrot.slane %v731, 4
        %v821 = vmax.f32 %v731, %v820
        %v822 = vrot.slane %v821, 2
        %v823 = vmax.f32 %v821, %v822
        %v824 = vrot.slane %v823, 1
        %v825 = vmax.f32 %v823, %v824
        %v826 = vrot.slane %v737, 4
        %v827 = vmax.f32 %v737, %v826
        %v828 = vrot.slane %v827, 2
        %v829 = vmax.f32 %v827, %v828
        %v830 = vrot.slane %v829, 1
        %v831 = vmax.f32 %v829, %v830
        %v832 = vrot.slane %v741, 4
        %v833 = vmax.f32 %v741, %v832
        %v834 = vrot.slane %v833, 2
        %v835 = vmax.f32 %v833, %v834
        %v836 = vrot.slane %v835, 1
        %v837 = vmax.f32 %v835, %v836
        %v838 = vrot.slane %v747, 4
        %v839 = vmax.f32 %v747, %v838
        %v840 = vrot.slane %v839, 2
        %v841 = vmax.f32 %v839, %v840
        %v842 = vrot.slane %v841, 1
        %v843 = vmax.f32 %v841, %v842
        %v844 = vrot.slane %v751, 4
        %v845 = vmax.f32 %v751, %v844
        %v846 = vrot.slane %v845, 2
        %v847 = vmax.f32 %v845, %v846
        %v848 = vrot.slane %v847, 1
        %v849 = vmax.f32 %v847, %v848
        %v850 = vmax.f32 %v759, %v753
        %v851 = vmax.f32 %v765, %v753
        %v852 = vmax.f32 %v771, %v753
        %v853 = vmax.f32 %v777, %v753
        %v854 = vmax.f32 %v783, %v753
        %v855 = vmax.f32 %v789, %v753
        %v856 = vmax.f32 %v795, %v753
        %v857 = vmax.f32 %v801, %v753
        %v858 = vmax.f32 %v807, %v753
        %v859 = vmax.f32 %v813, %v753
        %v860 = vmax.f32 %v819, %v753
        %v861 = vmax.f32 %v825, %v753
        %v862 = vmax.f32 %v831, %v753
        %v863 = vmax.f32 %v837, %v753
        %v864 = vmax.f32 %v843, %v753
        %v865 = vmax.f32 %v849, %v753
        %v866 = vlaneseq
        %v867 = vshrl.u32 %v866, 7
        %v868 = vsub.s32 0, %v867
        %v869 = vrot.slane %v850, %v868
        %v870 = vlaneseq
        %v871 = vshrl.u32 %v870, 7
        %v872 = vsub.s32 0, %v871
        %v873 = vrot.slane %v851, %v872
        %v874 = vlaneseq
        %v875 = vshrl.u32 %v874, 7
        %v876 = vsub.s32 0, %v875
        %v877 = vrot.slane %v852, %v876
        %v878 = vlaneseq
        %v879 = vshrl.u32 %v878, 7
        %v880 = vsub.s32 0, %v879
        %v881 = vrot.slane %v853, %v880
        %v882 = vlaneseq
        %v883 = vshrl.u32 %v882, 7
        %v884 = vsub.s32 0, %v883
        %v885 = vrot.slane %v854, %v884
        %v886 = vlaneseq
        %v887 = vshrl.u32 %v886, 7
        %v888 = vsub.s32 0, %v887
        %v889 = vrot.slane %v855, %v888
        %v890 = vlaneseq
        %v891 = vshrl.u32 %v890, 7
        %v892 = vsub.s32 0, %v891
        %v893 = vrot.slane %v856, %v892
        %v894 = vlaneseq
        %v895 = vshrl.u32 %v894, 7
        %v896 = vsub.s32 0, %v895
        %v897 = vrot.slane %v857, %v896
        %v898 = vlaneseq
        %v899 = vshrl.u32 %v898, 7
        %v900 = vsub.s32 0, %v899
        %v901 = vrot.slane %v858, %v900
        %v902 = vlaneseq
        %v903 = vshrl.u32 %v902, 7
        %v904 = vsub.s32 0, %v903
        %v905 = vrot.slane %v859, %v904
        %v906 = vlaneseq
        %v907 = vshrl.u32 %v906, 7
        %v908 = vsub.s32 0, %v907
        %v909 = vrot.slane %v860, %v908
        %v910 = vlaneseq
        %v911 = vshrl.u32 %v910, 7
        %v912 = vsub.s32 0, %v911
        %v913 = vrot.slane %v861, %v912
        %v914 = vlaneseq
        %v915 = vshrl.u32 %v914, 7
        %v916 = vsub.s32 0, %v915
        %v917 = vrot.slane %v862, %v916
        %v918 = vlaneseq
        %v919 = vshrl.u32 %v918, 7
        %v920 = vsub.s32 0, %v919
        %v921 = vrot.slane %v863, %v920
        %v922 = vlaneseq
        %v923 = vshrl.u32 %v922, 7
        %v924 = vsub.s32 0, %v923
        %v925 = vrot.slane %v864, %v924
        %v926 = vlaneseq
        %v927 = vshrl.u32 %v926, 7
        %v928 = vsub.s32 0, %v927
        %v929 = vrot.slane %v865, %v928
        %v930 = vsub.f32 %v677, %v869
        %v931 = vsub.f32 %v681, %v873
        %v932 = vsub.f32 %v687, %v877
        %v933 = vsub.f32 %v691, %v881
        %v934 = vsub.f32 %v697, %v885
        %v935 = vsub.f32 %v701, %v889
        %v936 = vsub.f32 %v707, %v893
        %v937 = vsub.f32 %v711, %v897
        %v938 = vsub.f32 %v717, %v901
        %v939 = vsub.f32 %v721, %v905
        %v940 = vsub.f32 %v727, %v909
        %v941 = vsub.f32 %v731, %v913
        %v942 = vsub.f32 %v737, %v917
        %v943 = vsub.f32 %v741, %v921
        %v944 = vsub.f32 %v747, %v925
        %v945 = vsub.f32 %v751, %v929
        %v946 = vmul.f32 %v930, 1.442695
        %v947 = vpow.pop %v946
        %v948 = vmul.f32 %v931, 1.442695
        %v949 = vpow.pop %v948
        %v950 = vmul.f32 %v932, 1.442695
        %v951 = vpow.pop %v950
        %v952 = vmul.f32 %v933, 1.442695
        %v953 = vpow.pop %v952
        %v954 = vmul.f32 %v934, 1.442695
        %v955 = vpow.pop %v954
        %v956 = vmul.f32 %v935, 1.442695
        %v957 = vpow.pop %v956
        %v958 = vmul.f32 %v936, 1.442695
        %v959 = vpow.pop %v958
        %v960 = vmul.f32 %v937, 1.442695
        %v961 = vpow.pop %v960
        %v962 = vmul.f32 %v938, 1.442695
        %v963 = vpow.pop %v962
        %v964 = vmul.f32 %v939, 1.442695
        %v965 = vpow.pop %v964
        %v966 = vmul.f32 %v940, 1.442695
        %v967 = vpow.pop %v966
        %v968 = vmul.f32 %v941, 1.442695
        %v969 = vpow.pop %v968
        %v970 = vmul.f32 %v942, 1.442695
        %v971 = vpow.pop %v970
        %v972 = vmul.f32 %v943, 1.442695
        %v973 = vpow.pop %v972
        %v974 = vmul.f32 %v944, 1.442695
        %v975 = vpow.pop %v974
        %v976 = vmul.f32 %v945, 1.442695
        %v977 = vpow.pop %v976
        %v978 = vsub.f32 %v753, %v850
        %v979 = vsub.f32 %v753, %v851
        %v980 = vsub.f32 %v753, %v852
        %v981 = vsub.f32 %v753, %v853
        %v982 = vsub.f32 %v753, %v854
        %v983 = vsub.f32 %v753, %v855
        %v984 = vsub.f32 %v753, %v856
        %v985 = vsub.f32 %v753, %v857
        %v986 = vsub.f32 %v753, %v858
        %v987 = vsub.f32 %v753, %v859
        %v988 = vsub.f32 %v753, %v860
        %v989 = vsub.f32 %v753, %v861
        %v990 = vsub.f32 %v753, %v862
        %v991 = vsub.f32 %v753, %v863
        %v992 = vsub.f32 %v753, %v864
        %v993 = vsub.f32 %v753, %v865
        %v994 = vmul.f32 %v978, 1.442695
        %v995 = vpow.pop %v994
        %v996 = vmul.f32 %v979, 1.442695
        %v997 = vpow.pop %v996
        %v998 = vmul.f32 %v980, 1.442695
        %v999 = vpow.pop %v998
        %v1000 = vmul.f32 %v981, 1.442695
        %v1001 = vpow.pop %v1000
        %v1002 = vmul.f32 %v982, 1.442695
        %v1003 = vpow.pop %v1002
        %v1004 = vmul.f32 %v983, 1.442695
        %v1005 = vpow.pop %v1004
        %v1006 = vmul.f32 %v984, 1.442695
        %v1007 = vpow.pop %v1006
        %v1008 = vmul.f32 %v985, 1.442695
        %v1009 = vpow.pop %v1008
        %v1010 = vmul.f32 %v986, 1.442695
        %v1011 = vpow.pop %v1010
        %v1012 = vmul.f32 %v987, 1.442695
        %v1013 = vpow.pop %v1012
        %v1014 = vmul.f32 %v988, 1.442695
        %v1015 = vpow.pop %v1014
        %v1016 = vmul.f32 %v989, 1.442695
        %v1017 = vpow.pop %v1016
        %v1018 = vmul.f32 %v990, 1.442695
        %v1019 = vpow.pop %v1018
        %v1020 = vmul.f32 %v991, 1.442695
        %v1021 = vpow.pop %v1020
        %v1022 = vmul.f32 %v992, 1.442695
        %v1023 = vpow.pop %v1022
        %v1024 = vmul.f32 %v993, 1.442695
        %v1025 = vpow.pop %v1024
        %v1026 = vrot.slane %v947, 4
        %v1027 = vadd.f32 %v947, %v1026
        %v1028 = vrot.slane %v1027, 2
        %v1029 = vadd.f32 %v1027, %v1028
        %v1030 = vrot.slane %v1029, 1
        %v1031 = vadd.f32 %v1029, %v1030
        %v1032 = vrot.slane %v949, 4
        %v1033 = vadd.f32 %v949, %v1032
        %v1034 = vrot.slane %v1033, 2
        %v1035 = vadd.f32 %v1033, %v1034
        %v1036 = vrot.slane %v1035, 1
        %v1037 = vadd.f32 %v1035, %v1036
        %v1038 = vrot.slane %v951, 4
        %v1039 = vadd.f32 %v951, %v1038
        %v1040 = vrot.slane %v1039, 2
        %v1041 = vadd.f32 %v1039, %v1040
        %v1042 = vrot.slane %v1041, 1
        %v1043 = vadd.f32 %v1041, %v1042
        %v1044 = vrot.slane %v953, 4
        %v1045 = vadd.f32 %v953, %v1044
        %v1046 = vrot.slane %v1045, 2
        %v1047 = vadd.f32 %v1045, %v1046
        %v1048 = vrot.slane %v1047, 1
        %v1049 = vadd.f32 %v1047, %v1048
        %v1050 = vrot.slane %v955, 4
        %v1051 = vadd.f32 %v955, %v1050
        %v1052 = vrot.slane %v1051, 2
        %v1053 = vadd.f32 %v1051, %v1052
        %v1054 = vrot.slane %v1053, 1
        %v1055 = vadd.f32 %v1053, %v1054
        %v1056 = vrot.slane %v957, 4
        %v1057 = vadd.f32 %v957, %v1056
        %v1058 = vrot.slane %v1057, 2
        %v1059 = vadd.f32 %v1057, %v1058
        %v1060 = vrot.slane %v1059, 1
        %v1061 = vadd.f32 %v1059, %v1060
        %v1062 = vrot.slane %v959, 4
        %v1063 = vadd.f32 %v959, %v1062
        %v1064 = vrot.slane %v1063, 2
        %v1065 = vadd.f32 %v1063, %v1064
        %v1066 = vrot.slane %v1065, 1
        %v1067 = vadd.f32 %v1065, %v1066
        %v1068 = vrot.slane %v961, 4
        %v1069 = vadd.f32 %v961, %v1068
        %v1070 = vrot.slane %v1069, 2
        %v1071 = vadd.f32 %v1069, %v1070
        %v1072 = vrot.slane %v1071, 1
        %v1073 = vadd.f32 %v1071, %v1072
        %v1074 = vrot.slane %v963, 4
        %v1075 = vadd.f32 %v963, %v1074
        %v1076 = vrot.slane %v1075, 2
        %v1077 = vadd.f32 %v1075, %v1076
        %v1078 = vrot.slane %v1077, 1
        %v1079 = vadd.f32 %v1077, %v1078
        %v1080 = vrot.slane %v965, 4
        %v1081 = vadd.f32 %v965, %v1080
        %v1082 = vrot.slane %v1081, 2
        %v1083 = vadd.f32 %v1081, %v1082
        %v1084 = vrot.slane %v1083, 1
        %v1085 = vadd.f32 %v1083, %v1084
        %v1086 = vrot.slane %v967, 4
        %v1087 = vadd.f32 %v967, %v1086
        %v1088 = vrot.slane %v1087, 2
        %v1089 = vadd.f32 %v1087, %v1088
        %v1090 = vrot.slane %v1089, 1
        %v1091 = vadd.f32 %v1089, %v1090
        %v1092 = vrot.slane %v969, 4
        %v1093 = vadd.f32 %v969, %v1092
        %v1094 = vrot.slane %v1093, 2
        %v1095 = vadd.f32 %v1093, %v1094
        %v1096 = vrot.slane %v1095, 1
        %v1097 = vadd.f32 %v1095, %v1096
        %v1098 = vrot.slane %v971, 4
        %v1099 = vadd.f32 %v971, %v1098
        %v1100 = vrot.slane %v1099, 2
        %v1101 = vadd.f32 %v1099, %v1100
        %v1102 = vrot.slane %v1101, 1
        %v1103 = vadd.f32 %v1101, %v1102
        %v1104 = vrot.slane %v973, 4
        %v1105 = vadd.f32 %v973, %v1104
        %v1106 = vrot.slane %v1105, 2
        %v1107 = vadd.f32 %v1105, %v1106
        %v1108 = vrot.slane %v1107, 1
        %v1109 = vadd.f32 %v1107, %v1108
        %v1110 = vrot.slane %v975, 4
        %v1111 = vadd.f32 %v975, %v1110
        %v1112 = vrot.slane %v1111, 2
        %v1113 = vadd.f32 %v1111, %v1112
        %v1114 = vrot.slane %v1113, 1
        %v1115 = vadd.f32 %v1113, %v1114
        %v1116 = vrot.slane %v977, 4
        %v1117 = vadd.f32 %v977, %v1116
        %v1118 = vrot.slane %v1117, 2
        %v1119 = vadd.f32 %v1117, %v1118
        %v1120 = vrot.slane %v1119, 1
        %v1121 = vadd.f32 %v1119, %v1120
        %v1122 = vadd.f32 %v1031, %v995
        %v1123 = vadd.f32 %v1037, %v997
        %v1124 = vadd.f32 %v1043, %v999
        %v1125 = vadd.f32 %v1049, %v1001
        %v1126 = vadd.f32 %v1055, %v1003
        %v1127 = vadd.f32 %v1061, %v1005
        %v1128 = vadd.f32 %v1067, %v1007
        %v1129 = vadd.f32 %v1073, %v1009
        %v1130 = vadd.f32 %v1079, %v1011
        %v1131 = vadd.f32 %v1085, %v1013
        %v1132 = vadd.f32 %v1091, %v1015
        %v1133 = vadd.f32 %v1097, %v1017
        %v1134 = vadd.f32 %v1103, %v1019
        %v1135 = vadd.f32 %v1109, %v1021
        %v1136 = vadd.f32 %v1115, %v1023
        %v1137 = vadd.f32 %v1121, %v1025
        %v1138 = vrcp.pop %v1122
        %v1139 = vrcp.pop %v1123
        %v1140 = vrcp.pop %v1124
        %v1141 = vrcp.pop %v1125
        %v1142 = vrcp.pop %v1126
        %v1143 = vrcp.pop %v1127
        %v1144 = vrcp.pop %v1128
        %v1145 = vrcp.pop %v1129
        %v1146 = vrcp.pop %v1130
        %v1147 = vrcp.pop %v1131
        %v1148 = vrcp.pop %v1132
        %v1149 = vrcp.pop %v1133
        %v1150 = vrcp.pop %v1134
        %v1151 = vrcp.pop %v1135
        %v1152 = vrcp.pop %v1136
        %v1153 = vrcp.pop %v1137
        %v1154 = vlaneseq
        %v1155 = vshrl.u32 %v1154, 7
        %v1156 = vsub.s32 0, %v1155
        %v1157 = vrot.slane %v1138, %v1156
        %v1158 = vlaneseq
        %v1159 = vshrl.u32 %v1158, 7
        %v1160 = vsub.s32 0, %v1159
        %v1161 = vrot.slane %v1139, %v1160
        %v1162 = vlaneseq
        %v1163 = vshrl.u32 %v1162, 7
        %v1164 = vsub.s32 0, %v1163
        %v1165 = vrot.slane %v1140, %v1164
        %v1166 = vlaneseq
        %v1167 = vshrl.u32 %v1166, 7
        %v1168 = vsub.s32 0, %v1167
        %v1169 = vrot.slane %v1141, %v1168
        %v1170 = vlaneseq
        %v1171 = vshrl.u32 %v1170, 7
        %v1172 = vsub.s32 0, %v1171
        %v1173 = vrot.slane %v1142, %v1172
        %v1174 = vlaneseq
        %v1175 = vshrl.u32 %v1174, 7
        %v1176 = vsub.s32 0, %v1175
        %v1177 = vrot.slane %v1143, %v1176
        %v1178 = vlaneseq
        %v1179 = vshrl.u32 %v1178, 7
        %v1180 = vsub.s32 0, %v1179
        %v1181 = vrot.slane %v1144, %v1180
        %v1182 = vlaneseq
        %v1183 = vshrl.u32 %v1182, 7
        %v1184 = vsub.s32 0, %v1183
        %v1185 = vrot.slane %v1145, %v1184
        %v1186 = vlaneseq
        %v1187 = vshrl.u32 %v1186, 7
        %v1188 = vsub.s32 0, %v1187
        %v1189 = vrot.slane %v1146, %v1188
        %v1190 = vlaneseq
        %v1191 = vshrl.u32 %v1190, 7
        %v1192 = vsub.s32 0, %v1191
        %v1193 = vrot.slane %v1147, %v1192
        %v1194 = vlaneseq
        %v1195 = vshrl.u32 %v1194, 7
        %v1196 = vsub.s32 0, %v1195
        %v1197 = vrot.slane %v1148, %v1196
        %v1198 = vlaneseq
        %v1199 = vshrl.u32 %v1198, 7
        %v1200 = vsub.s32 0, %v1199
        %v1201 = vrot.slane %v1149, %v1200
        %v1202 = vlaneseq
        %v1203 = vshrl.u32 %v1202, 7
        %v1204 = vsub.s32 0, %v1203
        %v1205 = vrot.slane %v1150, %v1204
        %v1206 = vlaneseq
        %v1207 = vshrl.u32 %v1206, 7
        %v1208 = vsub.s32 0, %v1207
        %v1209 = vrot.slane %v1151, %v1208
        %v1210 = vlaneseq
        %v1211 = vshrl.u32 %v1210, 7
        %v1212 = vsub.s32 0, %v1211
        %v1213 = vrot.slane %v1152, %v1212
        %v1214 = vlaneseq
        %v1215 = vshrl.u32 %v1214, 7
        %v1216 = vsub.s32 0, %v1215
        %v1217 = vrot.slane %v1153, %v1216
        %v1218 = vmul.f32 %v947, %v1157
        %v1219 = vmul.f32 %v949, %v1161
        %v1220 = vmul.f32 %v951, %v1165
        %v1221 = vmul.f32 %v953, %v1169
        %v1222 = vmul.f32 %v955, %v1173
        %v1223 = vmul.f32 %v957, %v1177
        %v1224 = vmul.f32 %v959, %v1181
        %v1225 = vmul.f32 %v961, %v1185
        %v1226 = vmul.f32 %v963, %v1189
        %v1227 = vmul.f32 %v965, %v1193
        %v1228 = vmul.f32 %v967, %v1197
        %v1229 = vmul.f32 %v969, %v1201
        %v1230 = vmul.f32 %v971, %v1205
        %v1231 = vmul.f32 %v973, %v1209
        %v1232 = vmul.f32 %v975, %v1213
        %v1233 = vmul.f32 %v977, %v1217
        %v1234 = vmul.f32 %v1218, %v675
        %v1235 = vmul.f32 %v1219, %v679
        %v1236 = vmul.f32 %v1220, %v685
        %v1237 = vmul.f32 %v1221, %v689
        %v1238 = vmul.f32 %v1222, %v695
        %v1239 = vmul.f32 %v1223, %v699
        %v1240 = vmul.f32 %v1224, %v705
        %v1241 = vmul.f32 %v1225, %v709
        %v1242 = vmul.f32 %v1226, %v715
        %v1243 = vmul.f32 %v1227, %v719
        %v1244 = vmul.f32 %v1228, %v725
        %v1245 = vmul.f32 %v1229, %v729
        %v1246 = vmul.f32 %v1230, %v735
        %v1247 = vmul.f32 %v1231, %v739
        %v1248 = vmul.f32 %v1232, %v745
        %v1249 = vmul.f32 %v1233, %v749
        %v1250 = vrot.slane %v1234, 4
        %v1251 = vadd.f32 %v1234, %v1250
        %v1252 = vrot.slane %v1251, 2
        %v1253 = vadd.f32 %v1251, %v1252
        %v1254 = vrot.slane %v1253, 1
        %v1255 = vadd.f32 %v1253, %v1254
        %v1256 = vrot.slane %v1235, 4
        %v1257 = vadd.f32 %v1235, %v1256
        %v1258 = vrot.slane %v1257, 2
        %v1259 = vadd.f32 %v1257, %v1258
        %v1260 = vrot.slane %v1259, 1
        %v1261 = vadd.f32 %v1259, %v1260
        %v1262 = vrot.slane %v1236, 4
        %v1263 = vadd.f32 %v1236, %v1262
        %v1264 = vrot.slane %v1263, 2
        %v1265 = vadd.f32 %v1263, %v1264
        %v1266 = vrot.slane %v1265, 1
        %v1267 = vadd.f32 %v1265, %v1266
        %v1268 = vrot.slane %v1237, 4
        %v1269 = vadd.f32 %v1237, %v1268
        %v1270 = vrot.slane %v1269, 2
        %v1271 = vadd.f32 %v1269, %v1270
        %v1272 = vrot.slane %v1271, 1
        %v1273 = vadd.f32 %v1271, %v1272
        %v1274 = vrot.slane %v1238, 4
        %v1275 = vadd.f32 %v1238, %v1274
        %v1276 = vrot.slane %v1275, 2
        %v1277 = vadd.f32 %v1275, %v1276
        %v1278 = vrot.slane %v1277, 1
        %v1279 = vadd.f32 %v1277, %v1278
        %v1280 = vrot.slane %v1239, 4
        %v1281 = vadd.f32 %v1239, %v1280
        %v1282 = vrot.slane %v1281, 2
        %v1283 = vadd.f32 %v1281, %v1282
        %v1284 = vrot.slane %v1283, 1
        %v1285 = vadd.f32 %v1283, %v1284
        %v1286 = vrot.slane %v1240, 4
        %v1287 = vadd.f32 %v1240, %v1286
        %v1288 = vrot.slane %v1287, 2
        %v1289 = vadd.f32 %v1287, %v1288
        %v1290 = vrot.slane %v1289, 1
        %v1291 = vadd.f32 %v1289, %v1290
        %v1292 = vrot.slane %v1241, 4
        %v1293 = vadd.f32 %v1241, %v1292
        %v1294 = vrot.slane %v1293, 2
        %v1295 = vadd.f32 %v1293, %v1294
        %v1296 = vrot.slane %v1295, 1
        %v1297 = vadd.f32 %v1295, %v1296
        %v1298 = vrot.slane %v1242, 4
        %v1299 = vadd.f32 %v1242, %v1298
        %v1300 = vrot.slane %v1299, 2
        %v1301 = vadd.f32 %v1299, %v1300
        %v1302 = vrot.slane %v1301, 1
        %v1303 = vadd.f32 %v1301, %v1302
        %v1304 = vrot.slane %v1243, 4
        %v1305 = vadd.f32 %v1243, %v1304
        %v1306 = vrot.slane %v1305, 2
        %v1307 = vadd.f32 %v1305, %v1306
        %v1308 = vrot.slane %v1307, 1
        %v1309 = vadd.f32 %v1307, %v1308
        %v1310 = vrot.slane %v1244, 4
        %v1311 = vadd.f32 %v1244, %v1310
        %v1312 = vrot.slane %v1311, 2
        %v1313 = vadd.f32 %v1311, %v1312
        %v1314 = vrot.slane %v1313, 1
        %v1315 = vadd.f32 %v1313, %v1314
        %v1316 = vrot.slane %v1245, 4
        %v1317 = vadd.f32 %v1245, %v1316
        %v1318 = vrot.slane %v1317, 2
        %v1319 = vadd.f32 %v1317, %v1318
        %v1320 = vrot.slane %v1319, 1
        %v1321 = vadd.f32 %v1319, %v1320
        %v1322 = vrot.slane %v1246, 4
        %v1323 = vadd.f32 %v1246, %v1322
        %v1324 = vrot.slane %v1323, 2
        %v1325 = vadd.f32 %v1323, %v1324
        %v1326 = vrot.slane %v1325, 1
        %v1327 = vadd.f32 %v1325, %v1326
        %v1328 = vrot.slane %v1247, 4
        %v1329 = vadd.f32 %v1247, %v1328
        %v1330 = vrot.slane %v1329, 2
        %v1331 = vadd.f32 %v1329, %v1330
        %v1332 = vrot.slane %v1331, 1
        %v1333 = vadd.f32 %v1331, %v1332
        %v1334 = vrot.slane %v1248, 4
        %v1335 = vadd.f32 %v1248, %v1334
        %v1336 = vrot.slane %v1335, 2
        %v1337 = vadd.f32 %v1335, %v1336
        %v1338 = vrot.slane %v1337, 1
        %v1339 = vadd.f32 %v1337, %v1338
        %v1340 = vrot.slane %v1249, 4
        %v1341 = vadd.f32 %v1249, %v1340
        %v1342 = vrot.slane %v1341, 2
        %v1343 = vadd.f32 %v1341, %v1342
        %v1344 = vrot.slane %v1343, 1
        %v1345 = vadd.f32 %v1343, %v1344
        %v1346 = vmul.f32 %v995, %v1138
        %v1347 = vmul.f32 %v997, %v1139
        %v1348 = vmul.f32 %v999, %v1140
        %v1349 = vmul.f32 %v1001, %v1141
        %v1350 = vmul.f32 %v1003, %v1142
        %v1351 = vmul.f32 %v1005, %v1143
        %v1352 = vmul.f32 %v1007, %v1144
        %v1353 = vmul.f32 %v1009, %v1145
        %v1354 = vmul.f32 %v1011, %v1146
        %v1355 = vmul.f32 %v1013, %v1147
        %v1356 = vmul.f32 %v1015, %v1148
        %v1357 = vmul.f32 %v1017, %v1149
        %v1358 = vmul.f32 %v1019, %v1150
        %v1359 = vmul.f32 %v1021, %v1151
        %v1360 = vmul.f32 %v1023, %v1152
        %v1361 = vmul.f32 %v1025, %v1153
        %v1362 = vld [vmem:[%s2] sm:$0x1]
        %v1364 = vlaneseq
        %v1365 = vshrl.u32 %v1364, 7
        %v1366 = vsub.s32 0, %v1365
        %v1367 = vrot.slane %v1362, %v1366
        %v1368 = vcombine.high %v1367, %v1367
        %v1370 = vunpack.c.l.s4 1966171168
        %v1371 = vunpack.c.0.s8 %v1370
        %v1372 = vlaneseq
        %v1373 = vshrl.u32 %v1372, 7
        %v1374 = vsub.s32 %v1371, %v1373
        %v1375 = vrot.slane %v1367, %v1374
        %v1377 = vunpack.c.l.s4 1966171168
        %v1378 = vunpack.c.0.s8 %v1377
        %v1379 = vlaneseq
        %v1380 = vshrl.u32 %v1379, 7
        %v1381 = vsub.s32 %v1378, %v1380
        %v1382 = vrot.slane %v1368, %v1381
        %v1383 = vcombine.high %v1375, %v1375
        %v1384 = vcombine.high %v1382, %v1382
        %v1386 = vunpack.c.l.s4 1966171168
        %v1387 = vunpack.c.0.s8 %v1386
        %v1388 = vlaneseq
        %v1389 = vshrl.u32 %v1388, 7
        %v1390 = vsub.s32 %v1387, %v1389
        %v1391 = vrot.slane %v1375, %v1390
        %v1393 = vunpack.c.l.s4 1966171168
        %v1394 = vunpack.c.0.s8 %v1393
        %v1395 = vlaneseq
        %v1396 = vshrl.u32 %v1395, 7
        %v1397 = vsub.s32 %v1394, %v1396
        %v1398 = vrot.slane %v1382, %v1397
        %v1400 = vunpack.c.l.s4 1966171168
        %v1401 = vunpack.c.0.s8 %v1400
        %v1402 = vlaneseq
        %v1403 = vshrl.u32 %v1402, 7
        %v1404 = vsub.s32 %v1401, %v1403
        %v1405 = vrot.slane %v1383, %v1404
        %v1407 = vunpack.c.l.s4 1966171168
        %v1408 = vunpack.c.0.s8 %v1407
        %v1409 = vlaneseq
        %v1410 = vshrl.u32 %v1409, 7
        %v1411 = vsub.s32 %v1408, %v1410
        %v1412 = vrot.slane %v1384, %v1411
        %v1413 = vcombine.high %v1391, %v1391
        %v1414 = vcombine.high %v1398, %v1398
        %v1415 = vcombine.high %v1405, %v1405
        %v1416 = vcombine.high %v1412, %v1412
        %v1425 = vmul.f32 %v1346, %v1391
        %v1426 = vmul.f32 %v1347, %v1405
        %v1427 = vmul.f32 %v1348, %v1413
        %v1428 = vmul.f32 %v1349, %v1415
        %v1429 = vmul.f32 %v1350, %v1398
        %v1430 = vmul.f32 %v1351, %v1412
        %v1431 = vmul.f32 %v1352, %v1414
        %v1432 = vmul.f32 %v1353, %v1416
        %v1433 = vmul.f32 %v1354, %v1391
        %v1434 = vmul.f32 %v1355, %v1405
        %v1435 = vmul.f32 %v1356, %v1413
        %v1436 = vmul.f32 %v1357, %v1415
        %v1437 = vmul.f32 %v1358, %v1398
        %v1438 = vmul.f32 %v1359, %v1412
        %v1439 = vmul.f32 %v1360, %v1414
        %v1440 = vmul.f32 %v1361, %v1416
        %v1441 = vadd.f32 %v1255, %v1425
        %v1442 = vadd.f32 %v1261, %v1426
        %v1443 = vadd.f32 %v1267, %v1427
        %v1444 = vadd.f32 %v1273, %v1428
        %v1445 = vadd.f32 %v1279, %v1429
        %v1446 = vadd.f32 %v1285, %v1430
        %v1447 = vadd.f32 %v1291, %v1431
        %v1448 = vadd.f32 %v1297, %v1432
        %v1449 = vadd.f32 %v1303, %v1433
        %v1450 = vadd.f32 %v1309, %v1434
        %v1451 = vadd.f32 %v1315, %v1435
        %v1452 = vadd.f32 %v1321, %v1436
        %v1453 = vadd.f32 %v1327, %v1437
        %v1454 = vadd.f32 %v1333, %v1438
        %v1455 = vadd.f32 %v1339, %v1439
        %v1456 = vadd.f32 %v1345, %v1440
        %v1457 = vpack.c.bf16 %v1441, %v1441
        %v1458 = vpack.c.bf16 %v1442, %v1442
        %v1459 = vpack.c.bf16 %v1443, %v1443
        %v1460 = vpack.c.bf16 %v1444, %v1444
        %v1461 = vpack.c.bf16 %v1445, %v1445
        %v1462 = vpack.c.bf16 %v1446, %v1446
        %v1463 = vpack.c.bf16 %v1447, %v1447
        %v1464 = vpack.c.bf16 %v1448, %v1448
        %v1465 = vpack.c.bf16 %v1449, %v1449
        %v1466 = vpack.c.bf16 %v1450, %v1450
        %v1467 = vpack.c.bf16 %v1451, %v1451
        %v1468 = vpack.c.bf16 %v1452, %v1452
        %v1469 = vpack.c.bf16 %v1453, %v1453
        %v1470 = vpack.c.bf16 %v1454, %v1454
        %v1471 = vpack.c.bf16 %v1455, %v1455
        %v1472 = vpack.c.bf16 %v1456, %v1456
        %v1473 = vld [vmem:[%s6] sm:$0xf]
        %v1474 = vld [vmem:[%s6 + $0x4] sm:$0xf]
        %v1475 = vld [vmem:[%s6 + $0x8] sm:$0xf]
        %v1476 = vld [vmem:[%s6 + $0xc] sm:$0xf]
        %v1477 = vld [vmem:[%s6 + $0x10] sm:$0xf]
        %v1478 = vld [vmem:[%s6 + $0x14] sm:$0xf]
        %v1479 = vld [vmem:[%s6 + $0x18] sm:$0xf]
        %v1480 = vld [vmem:[%s6 + $0x1c] sm:$0xf]
        %v1481 = vld [vmem:[%s6 + $0x20] sm:$0xf]
        %v1482 = vld [vmem:[%s6 + $0x24] sm:$0xf]
        %v1483 = vld [vmem:[%s6 + $0x28] sm:$0xf]
        %v1484 = vld [vmem:[%s6 + $0x2c] sm:$0xf]
        %v1485 = vld [vmem:[%s6 + $0x30] sm:$0xf]
        %v1486 = vld [vmem:[%s6 + $0x34] sm:$0xf]
        %v1487 = vld [vmem:[%s6 + $0x38] sm:$0xf]
        %v1488 = vld [vmem:[%s6 + $0x3c] sm:$0xf]
        %v1489 = vld [vmem:[%s7] sm:$0x1]
        %v1491 = vlaneseq
        %v1492 = vshrl.u32 %v1491, 7
        %v1493 = vsub.s32 0, %v1492
        %v1494 = vrot.slane %v1489, %v1493
        %v1512 = vunpack.c.l.b16 %v1457
        %v1513 = vunpack.c.l.b16 %v1458
        %v1514 = vunpack.c.l.b16 %v1459
        %v1515 = vunpack.c.l.b16 %v1460
        %v1516 = vunpack.c.l.b16 %v1461
        %v1517 = vunpack.c.l.b16 %v1462
        %v1518 = vunpack.c.l.b16 %v1463
        %v1519 = vunpack.c.l.b16 %v1464
        %v1520 = vunpack.c.l.b16 %v1465
        %v1521 = vunpack.c.l.b16 %v1466
        %v1522 = vunpack.c.l.b16 %v1467
        %v1523 = vunpack.c.l.b16 %v1468
        %v1524 = vunpack.c.l.b16 %v1469
        %v1525 = vunpack.c.l.b16 %v1470
        %v1526 = vunpack.c.l.b16 %v1471
        %v1527 = vunpack.c.l.b16 %v1472
        %v1528 = vrot.slane %v1513, 7
        %vm1529 = vcmask 1041409
        %v1530 = vsel %vm1529, %v1528, %v1512
        %v1531 = vrot.slane %v1514, 6
        %vm1532 = vcmask 1042434
        %v1533 = vsel %vm1532, %v1531, %v1530
        %v1534 = vrot.slane %v1515, 5
        %vm1535 = vcmask 1043459
        %v1536 = vsel %vm1535, %v1534, %v1533
        %v1537 = vrot.slane %v1516, 4
        %vm1538 = vcmask 1044484
        %v1539 = vsel %vm1538, %v1537, %v1536
        %v1540 = vrot.slane %v1517, 3
        %vm1541 = vcmask 1045509
        %v1542 = vsel %vm1541, %v1540, %v1539
        %v1543 = vrot.slane %v1518, 2
        %vm1544 = vcmask 1046534
        %v1545 = vsel %vm1544, %v1543, %v1542
        %v1546 = vrot.slane %v1519, 1
        %vm1547 = vcmask 1047559
        %v1548 = vsel %vm1547, %v1546, %v1545
        %v1549 = vrot.slane %v1521, 7
        %v1550 = vsel %vm1529, %v1549, %v1520
        %v1551 = vrot.slane %v1522, 6
        %v1552 = vsel %vm1532, %v1551, %v1550
        %v1553 = vrot.slane %v1523, 5
        %v1554 = vsel %vm1535, %v1553, %v1552
        %v1555 = vrot.slane %v1524, 4
        %v1556 = vsel %vm1538, %v1555, %v1554
        %v1557 = vrot.slane %v1525, 3
        %v1558 = vsel %vm1541, %v1557, %v1556
        %v1559 = vrot.slane %v1526, 2
        %v1560 = vsel %vm1544, %v1559, %v1558
        %v1561 = vrot.slane %v1527, 1
        %v1562 = vsel %vm1547, %v1561, %v1560
        %v1563 = vpack.c.b16 %v1562, %v1548
        %v1581 = vunpack.c.l.b16 %v1473
        %v1582 = vunpack.c.l.b16 %v1474
        %v1583 = vunpack.c.l.b16 %v1475
        %v1584 = vunpack.c.l.b16 %v1476
        %v1585 = vunpack.c.l.b16 %v1477
        %v1586 = vunpack.c.l.b16 %v1478
        %v1587 = vunpack.c.l.b16 %v1479
        %v1588 = vunpack.c.l.b16 %v1480
        %v1589 = vunpack.c.l.b16 %v1481
        %v1590 = vunpack.c.l.b16 %v1482
        %v1591 = vunpack.c.l.b16 %v1483
        %v1592 = vunpack.c.l.b16 %v1484
        %v1593 = vunpack.c.l.b16 %v1485
        %v1594 = vunpack.c.l.b16 %v1486
        %v1595 = vunpack.c.l.b16 %v1487
        %v1596 = vunpack.c.l.b16 %v1488
        %v1597 = vpack.c.b16 %v1582, %v1581
        %v1598 = vpack.c.b16 %v1584, %v1583
        %v1599 = vpack.c.b16 %v1586, %v1585
        %v1600 = vpack.c.b16 %v1588, %v1587
        %v1601 = vpack.c.b16 %v1590, %v1589
        %v1602 = vpack.c.b16 %v1592, %v1591
        %v1603 = vpack.c.b16 %v1594, %v1593
        %v1604 = vpack.c.b16 %v1596, %v1595
        %1613 = vmatprep.subr.bf16.mxu0 0
        %1614 = vmatpush1.bf16.msra.mxu0 %v1597
        %1615 = vmatprep.subr.bf16.mxu0 0
        %1616 = vmatpush1.bf16.msra.mxu0 %v1598
        %1617 = vmatprep.subr.bf16.mxu0 0
        %1618 = vmatpush1.bf16.msra.mxu0 %v1599
        %1619 = vmatprep.subr.bf16.mxu0 0
        %1620 = vmatpush1.bf16.msra.mxu0 %v1600
        %1621 = vmatprep.subr.bf16.mxu0 0
        %1622 = vmatpush1.bf16.msra.mxu0 %v1601
        %1623 = vmatprep.subr.bf16.mxu0 0
        %1624 = vmatpush1.bf16.msra.mxu0 %v1602
        %1625 = vmatprep.subr.bf16.mxu0 0
        %1626 = vmatpush1.bf16.msra.mxu0 %v1603
        %1627 = vmatprep.subr.bf16.mxu0 0
        %1628 = vmatpush1.bf16.msra.mxu0 %v1604
        %1629 = vmatprep.subr.bf16.mxu0 0
        %1630 = vmatpush1.bf16.msra.mxu0 0
        %1631 = vmatprep.subr.bf16.mxu0 0
        %1632 = vmatpush1.bf16.msra.mxu0 0
        %1633 = vmatprep.subr.bf16.mxu0 0
        %1634 = vmatpush1.bf16.msra.mxu0 0
        %1635 = vmatprep.subr.bf16.mxu0 0
        %1636 = vmatpush1.bf16.msra.mxu0 0
        %1637 = vmatprep.subr.bf16.mxu0 0
        %1638 = vmatpush1.bf16.msra.mxu0 0
        %1639 = vmatprep.subr.bf16.mxu0 0
        %1640 = vmatpush1.bf16.msra.mxu0 0
        %1641 = vmatprep.subr.bf16.mxu0 0
        %1642 = vmatpush1.bf16.msra.mxu0 0
        %1643 = vmatprep.subr.bf16.mxu0 0
        %1644 = vmatpush1.bf16.msra.mxu0 0
        %1645 = vmatprep.mubr.bf16.mxu0 0
        %1646 = vmatmul.mubr.bf16.gmra.mrb[0].mxu0 %v1563
        %v1647 = vpop.f32.mrb[0].mxu0
        %v1648 = vadd.f32 %v1494, %v1647
        %v1649 = vpop.f32.mrb[0].mxu0
        %v1650 = vpop.f32.mrb[0].mxu0
        %v1651 = vadd.f32 %v1494, %v1650
        %v1652 = vpop.f32.mrb[0].mxu0
        %1653 = vdwg.mxu0
        %v1654 = vld [vmem:[%s1] sm:$0x1]
        %v1656 = vlaneseq
        %v1657 = vshrl.u32 %v1656, 7
        %v1658 = vsub.s32 0, %v1657
        %v1659 = vrot.slane %v1654, %v1658
        %v1661 = vadd.f32 %v1659, %v1648
        %v1662 = vadd.f32 %v1659, %v1651
        %v1663 = vld [vmem:[%s8] sm:$0x1]
        %v1664 = vld [vmem:[%s9] sm:$0x1]
        %1665 = vadd.xlane.f32.xlu0 %v1661
        %v1666 = vpop.xlane.xlu0 %1665
        %1667 = vadd.xlane.f32.xlu0 %v1662
        %v1668 = vpop.xlane.xlu0 %1667
        %v1669 = vrcp.pop 128.0
        %v1670 = vmul.f32 %v1666, %v1669
        %v1671 = vmul.f32 %v1668, %v1669
        %v1672 = vsub.f32 %v1661, %v1670
        %v1673 = vsub.f32 %v1662, %v1671
        %v1674 = vmul.f32 %v1672, %v1672
        %v1675 = vmul.f32 %v1673, %v1673
        %1676 = vadd.xlane.f32.xlu0 %v1674
        %v1677 = vpop.xlane.xlu0 %1676
        %1678 = vadd.xlane.f32.xlu0 %v1675
        %v1679 = vpop.xlane.xlu0 %1678
        %v1680 = vmul.f32 %v1677, %v1669
        %v1681 = vmul.f32 %v1679, %v1669
        %v1682 = vadd.f32 %v1680, 1e-05
        %v1683 = vadd.f32 %v1681, 1e-05
        %v1684 = vrsqrt.pop %v1682
        %v1685 = vrsqrt.pop %v1683
        %v1686 = vmul.f32 %v1672, %v1684
        %v1687 = vmul.f32 %v1673, %v1685
        %v1689 = vlaneseq
        %v1690 = vshrl.u32 %v1689, 7
        %v1691 = vsub.s32 0, %v1690
        %v1692 = vrot.slane %v1663, %v1691
        %v1694 = vmul.f32 %v1686, %v1692
        %v1695 = vmul.f32 %v1687, %v1692
        %v1697 = vlaneseq
        %v1698 = vshrl.u32 %v1697, 7
        %v1699 = vsub.s32 0, %v1698
        %v1700 = vrot.slane %v1664, %v1699
        %v1702 = vadd.f32 %v1694, %v1700
        %v1703 = vadd.f32 %v1695, %v1700
        %v1704 = vpack.c.bf16 %v1703, %v1702
        %v1705 = vld [vmem:[%s10] sm:$0xff]
        %v1706 = vld [vmem:[%s10 + $0x8] sm:$0xff]
        %v1707 = vld [vmem:[%s10 + $0x10] sm:$0xff]
        %v1708 = vld [vmem:[%s10 + $0x18] sm:$0xff]
        %v1709 = vld [vmem:[%s10 + $0x20] sm:$0xff]
        %v1710 = vld [vmem:[%s10 + $0x28] sm:$0xff]
        %v1711 = vld [vmem:[%s10 + $0x30] sm:$0xff]
        %v1712 = vld [vmem:[%s10 + $0x38] sm:$0xff]
        %v1713 = vld [vmem:[%s10 + $0x40] sm:$0xff]
        %v1714 = vld [vmem:[%s10 + $0x48] sm:$0xff]
        %v1715 = vld [vmem:[%s10 + $0x50] sm:$0xff]
        %v1716 = vld [vmem:[%s10 + $0x58] sm:$0xff]
        %v1717 = vld [vmem:[%s10 + $0x60] sm:$0xff]
        %v1718 = vld [vmem:[%s10 + $0x68] sm:$0xff]
        %v1719 = vld [vmem:[%s10 + $0x70] sm:$0xff]
        %v1720 = vld [vmem:[%s10 + $0x78] sm:$0xff]
        %v1721 = vld [vmem:[%s10 + $0x80] sm:$0xff]
        %v1722 = vld [vmem:[%s10 + $0x88] sm:$0xff]
        %v1723 = vld [vmem:[%s10 + $0x90] sm:$0xff]
        %v1724 = vld [vmem:[%s10 + $0x98] sm:$0xff]
        %v1725 = vld [vmem:[%s10 + $0xa0] sm:$0xff]
        %v1726 = vld [vmem:[%s10 + $0xa8] sm:$0xff]
        %v1727 = vld [vmem:[%s10 + $0xb0] sm:$0xff]
        %v1728 = vld [vmem:[%s10 + $0xb8] sm:$0xff]
        %v1729 = vld [vmem:[%s10 + $0xc0] sm:$0xff]
        %v1730 = vld [vmem:[%s10 + $0xc8] sm:$0xff]
        %v1731 = vld [vmem:[%s10 + $0xd0] sm:$0xff]
        %v1732 = vld [vmem:[%s10 + $0xd8] sm:$0xff]
        %v1733 = vld [vmem:[%s10 + $0xe0] sm:$0xff]
        %v1734 = vld [vmem:[%s10 + $0xe8] sm:$0xff]
        %v1735 = vld [vmem:[%s10 + $0xf0] sm:$0xff]
        %v1736 = vld [vmem:[%s10 + $0xf8] sm:$0xff]
        %v1737 = vld [vmem:[%s11] sm:$0xf]
        %v1739 = vlaneseq
        %v1740 = vshrl.u32 %v1739, 7
        %v1741 = vsub.s32 0, %v1740
        %v1742 = vrot.slane %v1737, %v1741
        %v1743 = vlaneseq
        %v1744 = vshrl.u32 %v1743, 7
        %v1745 = vsub.s32 1, %v1744
        %v1746 = vrot.slane %v1737, %v1745
        %v1747 = vlaneseq
        %v1748 = vshrl.u32 %v1747, 7
        %v1749 = vsub.s32 2, %v1748
        %v1750 = vrot.slane %v1737, %v1749
        %v1751 = vlaneseq
        %v1752 = vshrl.u32 %v1751, 7
        %v1753 = vsub.s32 3, %v1752
        %v1754 = vrot.slane %v1737, %v1753
        %v1791 = vunpack.c.l.b16 %v1705
        %v1792 = vunpack.c.h.b16 %v1705
        %v1793 = vunpack.c.l.b16 %v1706
        %v1794 = vunpack.c.h.b16 %v1706
        %v1795 = vunpack.c.l.b16 %v1707
        %v1796 = vunpack.c.h.b16 %v1707
        %v1797 = vunpack.c.l.b16 %v1708
        %v1798 = vunpack.c.h.b16 %v1708
        %v1799 = vunpack.c.l.b16 %v1709
        %v1800 = vunpack.c.h.b16 %v1709
        %v1801 = vunpack.c.l.b16 %v1710
        %v1802 = vunpack.c.h.b16 %v1710
        %v1803 = vunpack.c.l.b16 %v1711
        %v1804 = vunpack.c.h.b16 %v1711
        %v1805 = vunpack.c.l.b16 %v1712
        %v1806 = vunpack.c.h.b16 %v1712
        %v1807 = vunpack.c.l.b16 %v1713
        %v1808 = vunpack.c.h.b16 %v1713
        %v1809 = vunpack.c.l.b16 %v1714
        %v1810 = vunpack.c.h.b16 %v1714
        %v1811 = vunpack.c.l.b16 %v1715
        %v1812 = vunpack.c.h.b16 %v1715
        %v1813 = vunpack.c.l.b16 %v1716
        %v1814 = vunpack.c.h.b16 %v1716
        %v1815 = vunpack.c.l.b16 %v1717
        %v1816 = vunpack.c.h.b16 %v1717
        %v1817 = vunpack.c.l.b16 %v1718
        %v1818 = vunpack.c.h.b16 %v1718
        %v1819 = vunpack.c.l.b16 %v1719
        %v1820 = vunpack.c.h.b16 %v1719
        %v1821 = vunpack.c.l.b16 %v1720
        %v1822 = vunpack.c.h.b16 %v1720
        %v1823 = vunpack.c.l.b16 %v1721
        %v1824 = vunpack.c.h.b16 %v1721
        %v1825 = vunpack.c.l.b16 %v1722
        %v1826 = vunpack.c.h.b16 %v1722
        %v1827 = vunpack.c.l.b16 %v1723
        %v1828 = vunpack.c.h.b16 %v1723
        %v1829 = vunpack.c.l.b16 %v1724
        %v1830 = vunpack.c.h.b16 %v1724
        %v1831 = vunpack.c.l.b16 %v1725
        %v1832 = vunpack.c.h.b16 %v1725
        %v1833 = vunpack.c.l.b16 %v1726
        %v1834 = vunpack.c.h.b16 %v1726
        %v1835 = vunpack.c.l.b16 %v1727
        %v1836 = vunpack.c.h.b16 %v1727
        %v1837 = vunpack.c.l.b16 %v1728
        %v1838 = vunpack.c.h.b16 %v1728
        %v1839 = vunpack.c.l.b16 %v1729
        %v1840 = vunpack.c.h.b16 %v1729
        %v1841 = vunpack.c.l.b16 %v1730
        %v1842 = vunpack.c.h.b16 %v1730
        %v1843 = vunpack.c.l.b16 %v1731
        %v1844 = vunpack.c.h.b16 %v1731
        %v1845 = vunpack.c.l.b16 %v1732
        %v1846 = vunpack.c.h.b16 %v1732
        %v1847 = vunpack.c.l.b16 %v1733
        %v1848 = vunpack.c.h.b16 %v1733
        %v1849 = vunpack.c.l.b16 %v1734
        %v1850 = vunpack.c.h.b16 %v1734
        %v1851 = vunpack.c.l.b16 %v1735
        %v1852 = vunpack.c.h.b16 %v1735
        %v1853 = vunpack.c.l.b16 %v1736
        %v1854 = vunpack.c.h.b16 %v1736
        %v1855 = vpack.c.b16 %v1795, %v1791
        %v1856 = vpack.c.b16 %v1796, %v1792
        %v1857 = vpack.c.b16 %v1797, %v1793
        %v1858 = vpack.c.b16 %v1798, %v1794
        %v1859 = vpack.c.b16 %v1803, %v1799
        %v1860 = vpack.c.b16 %v1804, %v1800
        %v1861 = vpack.c.b16 %v1805, %v1801
        %v1862 = vpack.c.b16 %v1806, %v1802
        %v1863 = vpack.c.b16 %v1811, %v1807
        %v1864 = vpack.c.b16 %v1812, %v1808
        %v1865 = vpack.c.b16 %v1813, %v1809
        %v1866 = vpack.c.b16 %v1814, %v1810
        %v1867 = vpack.c.b16 %v1819, %v1815
        %v1868 = vpack.c.b16 %v1820, %v1816
        %v1869 = vpack.c.b16 %v1821, %v1817
        %v1870 = vpack.c.b16 %v1822, %v1818
        %v1871 = vpack.c.b16 %v1827, %v1823
        %v1872 = vpack.c.b16 %v1828, %v1824
        %v1873 = vpack.c.b16 %v1829, %v1825
        %v1874 = vpack.c.b16 %v1830, %v1826
        %v1875 = vpack.c.b16 %v1835, %v1831
        %v1876 = vpack.c.b16 %v1836, %v1832
        %v1877 = vpack.c.b16 %v1837, %v1833
        %v1878 = vpack.c.b16 %v1838, %v1834
        %v1879 = vpack.c.b16 %v1843, %v1839
        %v1880 = vpack.c.b16 %v1844, %v1840
        %v1881 = vpack.c.b16 %v1845, %v1841
        %v1882 = vpack.c.b16 %v1846, %v1842
        %v1883 = vpack.c.b16 %v1851, %v1847
        %v1884 = vpack.c.b16 %v1852, %v1848
        %v1885 = vpack.c.b16 %v1853, %v1849
        %v1886 = vpack.c.b16 %v1854, %v1850
        %1919 = vmatprep.subr.bf16.mxu0 %v1856
        %1920 = vmatpush1.bf16.msra.mxu0 %v1855
        %1921 = vmatprep.subr.bf16.mxu0 %v1860
        %1922 = vmatpush1.bf16.msra.mxu0 %v1859
        %1923 = vmatprep.subr.bf16.mxu0 %v1864
        %1924 = vmatpush1.bf16.msra.mxu0 %v1863
        %1925 = vmatprep.subr.bf16.mxu0 %v1868
        %1926 = vmatpush1.bf16.msra.mxu0 %v1867
        %1927 = vmatprep.subr.bf16.mxu0 %v1872
        %1928 = vmatpush1.bf16.msra.mxu0 %v1871
        %1929 = vmatprep.subr.bf16.mxu0 %v1876
        %1930 = vmatpush1.bf16.msra.mxu0 %v1875
        %1931 = vmatprep.subr.bf16.mxu0 %v1880
        %1932 = vmatpush1.bf16.msra.mxu0 %v1879
        %1933 = vmatprep.subr.bf16.mxu0 %v1884
        %1934 = vmatpush1.bf16.msra.mxu0 %v1883
        %1935 = vmatprep.subr.bf16.mxu0 0
        %1936 = vmatpush1.bf16.msra.mxu0 0
        %1937 = vmatprep.subr.bf16.mxu0 0
        %1938 = vmatpush1.bf16.msra.mxu0 0
        %1939 = vmatprep.subr.bf16.mxu0 0
        %1940 = vmatpush1.bf16.msra.mxu0 0
        %1941 = vmatprep.subr.bf16.mxu0 0
        %1942 = vmatpush1.bf16.msra.mxu0 0
        %1943 = vmatprep.subr.bf16.mxu0 0
        %1944 = vmatpush1.bf16.msra.mxu0 0
        %1945 = vmatprep.subr.bf16.mxu0 0
        %1946 = vmatpush1.bf16.msra.mxu0 0
        %1947 = vmatprep.subr.bf16.mxu0 0
        %1948 = vmatpush1.bf16.msra.mxu0 0
        %1949 = vmatprep.subr.bf16.mxu0 0
        %1950 = vmatpush1.bf16.msra.mxu0 0
        %1951 = vmatprep.mubr.bf16.mxu0 0
        %1952 = vmatmul.mubr.bf16.gmra.mrb[0].mxu0 %v1704
        %v1953 = vpop.f32.mrb[0].mxu0
        %v1954 = vadd.f32 %v1742, %v1953
        %v1955 = vpop.f32.mrb[0].mxu0
        %v1956 = vadd.f32 %v1746, %v1955
        %v1957 = vpop.f32.mrb[0].mxu0
        %v1958 = vadd.f32 %v1742, %v1957
        %v1959 = vpop.f32.mrb[0].mxu0
        %v1960 = vadd.f32 %v1746, %v1959
        %1961 = vdwg.mxu0
        %1962 = vmatprep.subr.bf16.mxu0 %v1858
        %1963 = vmatpush1.bf16.msra.mxu0 %v1857
        %1964 = vmatprep.subr.bf16.mxu0 %v1862
        %1965 = vmatpush1.bf16.msra.mxu0 %v1861
        %1966 = vmatprep.subr.bf16.mxu0 %v1866
        %1967 = vmatpush1.bf16.msra.mxu0 %v1865
        %1968 = vmatprep.subr.bf16.mxu0 %v1870
        %1969 = vmatpush1.bf16.msra.mxu0 %v1869
        %1970 = vmatprep.subr.bf16.mxu0 %v1874
        %1971 = vmatpush1.bf16.msra.mxu0 %v1873
        %1972 = vmatprep.subr.bf16.mxu0 %v1878
        %1973 = vmatpush1.bf16.msra.mxu0 %v1877
        %1974 = vmatprep.subr.bf16.mxu0 %v1882
        %1975 = vmatpush1.bf16.msra.mxu0 %v1881
        %1976 = vmatprep.subr.bf16.mxu0 %v1886
        %1977 = vmatpush1.bf16.msra.mxu0 %v1885
        %1978 = vmatprep.subr.bf16.mxu0 0
        %1979 = vmatpush1.bf16.msra.mxu0 0
        %1980 = vmatprep.subr.bf16.mxu0 0
        %1981 = vmatpush1.bf16.msra.mxu0 0
        %1982 = vmatprep.subr.bf16.mxu0 0
        %1983 = vmatpush1.bf16.msra.mxu0 0
        %1984 = vmatprep.subr.bf16.mxu0 0
        %1985 = vmatpush1.bf16.msra.mxu0 0
        %1986 = vmatprep.subr.bf16.mxu0 0
        %1987 = vmatpush1.bf16.msra.mxu0 0
        %1988 = vmatprep.subr.bf16.mxu0 0
        %1989 = vmatpush1.bf16.msra.mxu0 0
        %1990 = vmatprep.subr.bf16.mxu0 0
        %1991 = vmatpush1.bf16.msra.mxu0 0
        %1992 = vmatprep.subr.bf16.mxu0 0
        %1993 = vmatpush1.bf16.msra.mxu0 0
        %1994 = vmatprep.mubr.bf16.mxu0 0
        %1995 = vmatmul.mubr.bf16.gmra.mrb[0].mxu0 %v1704
        %v1996 = vpop.f32.mrb[0].mxu0
        %v1997 = vadd.f32 %v1750, %v1996
        %v1998 = vpop.f32.mrb[0].mxu0
        %v1999 = vadd.f32 %v1754, %v1998
        %v2000 = vpop.f32.mrb[0].mxu0
        %v2001 = vadd.f32 %v1750, %v2000
        %v2002 = vpop.f32.mrb[0].mxu0
        %v2003 = vadd.f32 %v1754, %v2002
        %2004 = vdwg.mxu0
        %v2005 = vmax.f32 %v1954, 0.0
        %v2006 = vmax.f32 %v1956, 0.0
        %v2007 = vmax.f32 %v1997, 0.0
        %v2008 = vmax.f32 %v1999, 0.0
        %v2009 = vmax.f32 %v1958, 0.0
        %v2010 = vmax.f32 %v1960, 0.0
        %v2011 = vmax.f32 %v2001, 0.0
        %v2012 = vmax.f32 %v2003, 0.0
        %v2013 = vpack.c.bf16 %v2009, %v2005
        %v2014 = vpack.c.bf16 %v2010, %v2006
        %v2015 = vpack.c.bf16 %v2011, %v2007
        %v2016 = vpack.c.bf16 %v2012, %v2008
        %v2017 = vld [vmem:[%s12] sm:$0xf]
        %v2018 = vld [vmem:[%s12 + $0x4] sm:$0xf]
        %v2019 = vld [vmem:[%s12 + $0x8] sm:$0xf]
        %v2020 = vld [vmem:[%s12 + $0xc] sm:$0xf]
        %v2021 = vld [vmem:[%s12 + $0x10] sm:$0xf]
        %v2022 = vld [vmem:[%s12 + $0x14] sm:$0xf]
        %v2023 = vld [vmem:[%s12 + $0x18] sm:$0xf]
        %v2024 = vld [vmem:[%s12 + $0x1c] sm:$0xf]
        %v2025 = vld [vmem:[%s12 + $0x20] sm:$0xf]
        %v2026 = vld [vmem:[%s12 + $0x24] sm:$0xf]
        %v2027 = vld [vmem:[%s12 + $0x28] sm:$0xf]
        %v2028 = vld [vmem:[%s12 + $0x2c] sm:$0xf]
        %v2029 = vld [vmem:[%s12 + $0x30] sm:$0xf]
        %v2030 = vld [vmem:[%s12 + $0x34] sm:$0xf]
        %v2031 = vld [vmem:[%s12 + $0x38] sm:$0xf]
        %v2032 = vld [vmem:[%s12 + $0x3c] sm:$0xf]
        %v2033 = vld [vmem:[%s12 + $0x40] sm:$0xf]
        %v2034 = vld [vmem:[%s12 + $0x44] sm:$0xf]
        %v2035 = vld [vmem:[%s12 + $0x48] sm:$0xf]
        %v2036 = vld [vmem:[%s12 + $0x4c] sm:$0xf]
        %v2037 = vld [vmem:[%s12 + $0x50] sm:$0xf]
        %v2038 = vld [vmem:[%s12 + $0x54] sm:$0xf]
        %v2039 = vld [vmem:[%s12 + $0x58] sm:$0xf]
        %v2040 = vld [vmem:[%s12 + $0x5c] sm:$0xf]
        %v2041 = vld [vmem:[%s12 + $0x60] sm:$0xf]
        %v2042 = vld [vmem:[%s12 + $0x64] sm:$0xf]
        %v2043 = vld [vmem:[%s12 + $0x68] sm:$0xf]
        %v2044 = vld [vmem:[%s12 + $0x6c] sm:$0xf]
        %v2045 = vld [vmem:[%s12 + $0x70] sm:$0xf]
        %v2046 = vld [vmem:[%s12 + $0x74] sm:$0xf]
        %v2047 = vld [vmem:[%s12 + $0x78] sm:$0xf]
        %v2048 = vld [vmem:[%s12 + $0x7c] sm:$0xf]
        %v2049 = vld [vmem:[%s12 + $0x80] sm:$0xf]
        %v2050 = vld [vmem:[%s12 + $0x84] sm:$0xf]
        %v2051 = vld [vmem:[%s12 + $0x88] sm:$0xf]
        %v2052 = vld [vmem:[%s12 + $0x8c] sm:$0xf]
        %v2053 = vld [vmem:[%s12 + $0x90] sm:$0xf]
        %v2054 = vld [vmem:[%s12 + $0x94] sm:$0xf]
        %v2055 = vld [vmem:[%s12 + $0x98] sm:$0xf]
        %v2056 = vld [vmem:[%s12 + $0x9c] sm:$0xf]
        %v2057 = vld [vmem:[%s12 + $0xa0] sm:$0xf]
        %v2058 = vld [vmem:[%s12 + $0xa4] sm:$0xf]
        %v2059 = vld [vmem:[%s12 + $0xa8] sm:$0xf]
        %v2060 = vld [vmem:[%s12 + $0xac] sm:$0xf]
        %v2061 = vld [vmem:[%s12 + $0xb0] sm:$0xf]
        %v2062 = vld [vmem:[%s12 + $0xb4] sm:$0xf]
        %v2063 = vld [vmem:[%s12 + $0xb8] sm:$0xf]
        %v2064 = vld [vmem:[%s12 + $0xbc] sm:$0xf]
        %v2065 = vld [vmem:[%s12 + $0xc0] sm:$0xf]
        %v2066 = vld [vmem:[%s12 + $0xc4] sm:$0xf]
        %v2067 = vld [vmem:[%s12 + $0xc8] sm:$0xf]
        %v2068 = vld [vmem:[%s12 + $0xcc] sm:$0xf]
        %v2069 = vld [vmem:[%s12 + $0xd0] sm:$0xf]
        %v2070 = vld [vmem:[%s12 + $0xd4] sm:$0xf]
        %v2071 = vld [vmem:[%s12 + $0xd8] sm:$0xf]
        %v2072 = vld [vmem:[%s12 + $0xdc] sm:$0xf]
        %v2073 = vld [vmem:[%s12 + $0xe0] sm:$0xf]
        %v2074 = vld [vmem:[%s12 + $0xe4] sm:$0xf]
        %v2075 = vld [vmem:[%s12 + $0xe8] sm:$0xf]
        %v2076 = vld [vmem:[%s12 + $0xec] sm:$0xf]
        %v2077 = vld [vmem:[%s12 + $0xf0] sm:$0xf]
        %v2078 = vld [vmem:[%s12 + $0xf4] sm:$0xf]
        %v2079 = vld [vmem:[%s12 + $0xf8] sm:$0xf]
        %v2080 = vld [vmem:[%s12 + $0xfc] sm:$0xf]
        %v2081 = vld [vmem:[%s13] sm:$0x1]
        %v2083 = vlaneseq
        %v2084 = vshrl.u32 %v2083, 7
        %v2085 = vsub.s32 0, %v2084
        %v2086 = vrot.slane %v2081, %v2085
        %v2152 = vunpack.c.l.b16 %v2017
        %v2153 = vunpack.c.l.b16 %v2018
        %v2154 = vunpack.c.l.b16 %v2019
        %v2155 = vunpack.c.l.b16 %v2020
        %v2156 = vunpack.c.l.b16 %v2021
        %v2157 = vunpack.c.l.b16 %v2022
        %v2158 = vunpack.c.l.b16 %v2023
        %v2159 = vunpack.c.l.b16 %v2024
        %v2160 = vunpack.c.l.b16 %v2025
        %v2161 = vunpack.c.l.b16 %v2026
        %v2162 = vunpack.c.l.b16 %v2027
        %v2163 = vunpack.c.l.b16 %v2028
        %v2164 = vunpack.c.l.b16 %v2029
        %v2165 = vunpack.c.l.b16 %v2030
        %v2166 = vunpack.c.l.b16 %v2031
        %v2167 = vunpack.c.l.b16 %v2032
        %v2168 = vunpack.c.l.b16 %v2033
        %v2169 = vunpack.c.l.b16 %v2034
        %v2170 = vunpack.c.l.b16 %v2035
        %v2171 = vunpack.c.l.b16 %v2036
        %v2172 = vunpack.c.l.b16 %v2037
        %v2173 = vunpack.c.l.b16 %v2038
        %v2174 = vunpack.c.l.b16 %v2039
        %v2175 = vunpack.c.l.b16 %v2040
        %v2176 = vunpack.c.l.b16 %v2041
        %v2177 = vunpack.c.l.b16 %v2042
        %v2178 = vunpack.c.l.b16 %v2043
        %v2179 = vunpack.c.l.b16 %v2044
        %v2180 = vunpack.c.l.b16 %v2045
        %v2181 = vunpack.c.l.b16 %v2046
        %v2182 = vunpack.c.l.b16 %v2047
        %v2183 = vunpack.c.l.b16 %v2048
        %v2184 = vunpack.c.l.b16 %v2049
        %v2185 = vunpack.c.l.b16 %v2050
        %v2186 = vunpack.c.l.b16 %v2051
        %v2187 = vunpack.c.l.b16 %v2052
        %v2188 = vunpack.c.l.b16 %v2053
        %v2189 = vunpack.c.l.b16 %v2054
        %v2190 = vunpack.c.l.b16 %v2055
        %v2191 = vunpack.c.l.b16 %v2056
        %v2192 = vunpack.c.l.b16 %v2057
        %v2193 = vunpack.c.l.b16 %v2058
        %v2194 = vunpack.c.l.b16 %v2059
        %v2195 = vunpack.c.l.b16 %v2060
        %v2196 = vunpack.c.l.b16 %v2061
        %v2197 = vunpack.c.l.b16 %v2062
        %v2198 = vunpack.c.l.b16 %v2063
        %v2199 = vunpack.c.l.b16 %v2064
        %v2200 = vunpack.c.l.b16 %v2065
        %v2201 = vunpack.c.l.b16 %v2066
        %v2202 = vunpack.c.l.b16 %v2067
        %v2203 = vunpack.c.l.b16 %v2068
        %v2204 = vunpack.c.l.b16 %v2069
        %v2205 = vunpack.c.l.b16 %v2070
        %v2206 = vunpack.c.l.b16 %v2071
        %v2207 = vunpack.c.l.b16 %v2072
        %v2208 = vunpack.c.l.b16 %v2073
        %v2209 = vunpack.c.l.b16 %v2074
        %v2210 = vunpack.c.l.b16 %v2075
        %v2211 = vunpack.c.l.b16 %v2076
        %v2212 = vunpack.c.l.b16 %v2077
        %v2213 = vunpack.c.l.b16 %v2078
        %v2214 = vunpack.c.l.b16 %v2079
        %v2215 = vunpack.c.l.b16 %v2080
        %v2216 = vpack.c.b16 %v2153, %v2152
        %v2217 = vpack.c.b16 %v2155, %v2154
        %v2218 = vpack.c.b16 %v2157, %v2156
        %v2219 = vpack.c.b16 %v2159, %v2158
        %v2220 = vpack.c.b16 %v2161, %v2160
        %v2221 = vpack.c.b16 %v2163, %v2162
        %v2222 = vpack.c.b16 %v2165, %v2164
        %v2223 = vpack.c.b16 %v2167, %v2166
        %v2224 = vpack.c.b16 %v2169, %v2168
        %v2225 = vpack.c.b16 %v2171, %v2170
        %v2226 = vpack.c.b16 %v2173, %v2172
        %v2227 = vpack.c.b16 %v2175, %v2174
        %v2228 = vpack.c.b16 %v2177, %v2176
        %v2229 = vpack.c.b16 %v2179, %v2178
        %v2230 = vpack.c.b16 %v2181, %v2180
        %v2231 = vpack.c.b16 %v2183, %v2182
        %v2232 = vpack.c.b16 %v2185, %v2184
        %v2233 = vpack.c.b16 %v2187, %v2186
        %v2234 = vpack.c.b16 %v2189, %v2188
        %v2235 = vpack.c.b16 %v2191, %v2190
        %v2236 = vpack.c.b16 %v2193, %v2192
        %v2237 = vpack.c.b16 %v2195, %v2194
        %v2238 = vpack.c.b16 %v2197, %v2196
        %v2239 = vpack.c.b16 %v2199, %v2198
        %v2240 = vpack.c.b16 %v2201, %v2200
        %v2241 = vpack.c.b16 %v2203, %v2202
        %v2242 = vpack.c.b16 %v2205, %v2204
        %v2243 = vpack.c.b16 %v2207, %v2206
        %v2244 = vpack.c.b16 %v2209, %v2208
        %v2245 = vpack.c.b16 %v2211, %v2210
        %v2246 = vpack.c.b16 %v2213, %v2212
        %v2247 = vpack.c.b16 %v2215, %v2214
        %2280 = vmatprep.subr.bf16.mxu0 0
        %2281 = vmatpush1.bf16.msra.mxu0 %v2216
        %2282 = vmatprep.subr.bf16.mxu0 0
        %2283 = vmatpush1.bf16.msra.mxu0 %v2217
        %2284 = vmatprep.subr.bf16.mxu0 0
        %2285 = vmatpush1.bf16.msra.mxu0 %v2218
        %2286 = vmatprep.subr.bf16.mxu0 0
        %2287 = vmatpush1.bf16.msra.mxu0 %v2219
        %2288 = vmatprep.subr.bf16.mxu0 0
        %2289 = vmatpush1.bf16.msra.mxu0 %v2220
        %2290 = vmatprep.subr.bf16.mxu0 0
        %2291 = vmatpush1.bf16.msra.mxu0 %v2221
        %2292 = vmatprep.subr.bf16.mxu0 0
        %2293 = vmatpush1.bf16.msra.mxu0 %v2222
        %2294 = vmatprep.subr.bf16.mxu0 0
        %2295 = vmatpush1.bf16.msra.mxu0 %v2223
        %2296 = vmatprep.subr.bf16.mxu0 0
        %2297 = vmatpush1.bf16.msra.mxu0 %v2224
        %2298 = vmatprep.subr.bf16.mxu0 0
        %2299 = vmatpush1.bf16.msra.mxu0 %v2225
        %2300 = vmatprep.subr.bf16.mxu0 0
        %2301 = vmatpush1.bf16.msra.mxu0 %v2226
        %2302 = vmatprep.subr.bf16.mxu0 0
        %2303 = vmatpush1.bf16.msra.mxu0 %v2227
        %2304 = vmatprep.subr.bf16.mxu0 0
        %2305 = vmatpush1.bf16.msra.mxu0 %v2228
        %2306 = vmatprep.subr.bf16.mxu0 0
        %2307 = vmatpush1.bf16.msra.mxu0 %v2229
        %2308 = vmatprep.subr.bf16.mxu0 0
        %2309 = vmatpush1.bf16.msra.mxu0 %v2230
        %2310 = vmatprep.subr.bf16.mxu0 0
        %2311 = vmatpush1.bf16.msra.mxu0 %v2231
        %2312 = vmatprep.mubr.bf16.mxu0 %v2014
        %2313 = vmatmul.mubr.bf16.gmra.mrb[0].mxu0 %v2013
        %v2314 = vpop.f32.mrb[0].mxu0
        %v2315 = vadd.f32 %v2086, %v2314
        %v2316 = vpop.f32.mrb[0].mxu0
        %v2317 = vpop.f32.mrb[0].mxu0
        %v2318 = vadd.f32 %v2086, %v2317
        %v2319 = vpop.f32.mrb[0].mxu0
        %2320 = vdwg.mxu0
        %2321 = vmatprep.subr.bf16.mxu0 0
        %2322 = vmatpush1.bf16.msra.mxu0 %v2232
        %2323 = vmatprep.subr.bf16.mxu0 0
        %2324 = vmatpush1.bf16.msra.mxu0 %v2233
        %2325 = vmatprep.subr.bf16.mxu0 0
        %2326 = vmatpush1.bf16.msra.mxu0 %v2234
        %2327 = vmatprep.subr.bf16.mxu0 0
        %2328 = vmatpush1.bf16.msra.mxu0 %v2235
        %2329 = vmatprep.subr.bf16.mxu0 0
        %2330 = vmatpush1.bf16.msra.mxu0 %v2236
        %2331 = vmatprep.subr.bf16.mxu0 0
        %2332 = vmatpush1.bf16.msra.mxu0 %v2237
        %2333 = vmatprep.subr.bf16.mxu0 0
        %2334 = vmatpush1.bf16.msra.mxu0 %v2238
        %2335 = vmatprep.subr.bf16.mxu0 0
        %2336 = vmatpush1.bf16.msra.mxu0 %v2239
        %2337 = vmatprep.subr.bf16.mxu0 0
        %2338 = vmatpush1.bf16.msra.mxu0 %v2240
        %2339 = vmatprep.subr.bf16.mxu0 0
        %2340 = vmatpush1.bf16.msra.mxu0 %v2241
        %2341 = vmatprep.subr.bf16.mxu0 0
        %2342 = vmatpush1.bf16.msra.mxu0 %v2242
        %2343 = vmatprep.subr.bf16.mxu0 0
        %2344 = vmatpush1.bf16.msra.mxu0 %v2243
        %2345 = vmatprep.subr.bf16.mxu0 0
        %2346 = vmatpush1.bf16.msra.mxu0 %v2244
        %2347 = vmatprep.subr.bf16.mxu0 0
        %2348 = vmatpush1.bf16.msra.mxu0 %v2245
        %2349 = vmatprep.subr.bf16.mxu0 0
        %2350 = vmatpush1.bf16.msra.mxu0 %v2246
        %2351 = vmatprep.subr.bf16.mxu0 0
        %2352 = vmatpush1.bf16.msra.mxu0 %v2247
        %2353 = vmatprep.mubr.bf16.mxu0 %v2016
        %2354 = vmatmul.mubr.bf16.gmra.mrb[0].mxu0 %v2015
        %v2355 = vpop.f32.mrb[0].mxu0
        %v2356 = vadd.f32 %v2315, %v2355
        %v2357 = vpop.f32.mrb[0].mxu0
        %v2358 = vpop.f32.mrb[0].mxu0
        %v2359 = vadd.f32 %v2318, %v2358
        %v2360 = vpop.f32.mrb[0].mxu0
        %2361 = vdwg.mxu0
        %v2362 = vadd.f32 %v1702, %v2356
        %v2363 = vadd.f32 %v1703, %v2359
        %v2364 = vld [vmem:[%s14] sm:$0x1]
        %v2365 = vld [vmem:[%s15] sm:$0x1]
        %2366 = vadd.xlane.f32.xlu0 %v2362
        %v2367 = vpop.xlane.xlu0 %2366
        %2368 = vadd.xlane.f32.xlu0 %v2363
        %v2369 = vpop.xlane.xlu0 %2368
        %v2370 = vmul.f32 %v2367, %v1669
        %v2371 = vmul.f32 %v2369, %v1669
        %v2372 = vsub.f32 %v2362, %v2370
        %v2373 = vsub.f32 %v2363, %v2371
        %v2374 = vmul.f32 %v2372, %v2372
        %v2375 = vmul.f32 %v2373, %v2373
        %2376 = vadd.xlane.f32.xlu0 %v2374
        %v2377 = vpop.xlane.xlu0 %2376
        %2378 = vadd.xlane.f32.xlu0 %v2375
        %v2379 = vpop.xlane.xlu0 %2378
        %v2380 = vmul.f32 %v2377, %v1669
        %v2381 = vmul.f32 %v2379, %v1669
        %v2382 = vadd.f32 %v2380, 1e-05
        %v2383 = vadd.f32 %v2381, 1e-05
        %v2384 = vrsqrt.pop %v2382
        %v2385 = vrsqrt.pop %v2383
        %v2386 = vmul.f32 %v2372, %v2384
        %v2387 = vmul.f32 %v2373, %v2385
        %v2389 = vlaneseq
        %v2390 = vshrl.u32 %v2389, 7
        %v2391 = vsub.s32 0, %v2390
        %v2392 = vrot.slane %v2364, %v2391
        %v2394 = vmul.f32 %v2386, %v2392
        %v2395 = vmul.f32 %v2387, %v2392
        %v2397 = vlaneseq
        %v2398 = vshrl.u32 %v2397, 7
        %v2399 = vsub.s32 0, %v2398
        %v2400 = vrot.slane %v2365, %v2399
        %v2402 = vadd.f32 %v2394, %v2400
        %v2403 = vadd.f32 %v2395, %v2400
        %2404 = vst [vmem:[%s564] sm:$0xff] %v2402
        %2405 = vst [vmem:[%s564 + $0x8] sm:$0xff] %v2403
        %s2406 = sand.u32 %s379, 1
        %s2407 = scalar_lea.sflag [#allocation4], %s2406
        %s2408 = sand.u32 %s379, 1
        %s2409 = smul.addr %s2408, 16
        %s2410 = scalar_lea.vmem [#allocation3], %s2409
        // Predicated region
        $region126: #{cls_extractor.1} parent=120 // pred_check
          %p2411 = pneg %p389
        $region127: #{cls_extractor.1} parent=120 // pred_check_branch
          %2413 = sbr.rel (%p2411) target = $region129
        $region128: #{cls_extractor.1} parent=120 // pred_region
          %s2414 = smul.u32 2, %s30
          %s2416 = ssub.s32 256, 256
          %2417 = vsyncadd %s2407, %s2416
          %s2418 = smul.addr %s2414, 128
          %s2419 = scalar_lea.hbm %s16, %s2418
          %s2420 = sshll.u32 %s2410, 4
          %s2421 = int_to_ptr.vmem [resolvable:$true] %s2420
          %2426 = dma.vmem_to_hbm [thread:$0]  %s2421, 256, %s2419, %s2407, 128, 128, 8
        $region129: #{cls_extractor.1} parent=120 // pred_fallthru
          _
      $region121: #{cls_extractor.1} parent=5 // pred_fallthru
        _
      %p2427 = scmp.le.s32.totalorder 2, %s25
      // Predicated region
      $region130: #{cls_extractor.1} parent=5 // pred_check
        %p2428 = pneg %p2427
      $region131: #{cls_extractor.1} parent=5 // pred_check_branch
        %2430 = sbr.rel (%p2428) target = $region133
      $region132: #{cls_extractor.1} parent=5 // pred_region
        %s2431 = ssub.s32 %s25, 2
        // Predicated region
        $region134: #{cls_extractor.1} parent=132 // pred_check
          %p2432 = pneg %p395
        $region135: #{cls_extractor.1} parent=132 // pred_check_branch
          %2434 = sbr.rel (%p2432) target = $region137
        $region136: #{cls_extractor.1} parent=132 // pred_region
          %s2435 = sand.u32 %s380, 1
          %s2436 = scalar_lea.sflag [#allocation4], %s2435
          %s2437 = sand.u32 %s380, 1
          %s2438 = smul.addr %s2437, 16
          %s2439 = scalar_lea.vmem [#allocation3], %s2438
          %2440 = dma.done %s2436, 256
        $region137: #{cls_extractor.1} parent=132 // pred_fallthru
          _
      $region133: #{cls_extractor.1} parent=5 // pred_fallthru
        _
    $region6: #{cls_extractor.1} parent=1 // loop_footer
      %s29 = sadd.s32 1, %s25
    $region7: #{cls_extractor.1} parent=1 // loop_footer_branch
      %24 = sbr.rel target = $region3
    $region8: #{cls_extractor.1} parent=1 // loop_exit
      _
    %2441 = vsyncpa [#allocation4], 1
    %s2442 = scalar_lea.sflag [#allocation4], 1
    %2443 = vsyncpa %s2442, 1

</llo_original>
